<compile_context>
chip_gen: v7x
topology: tpu7x:2x2x1
jax: 0.10.0
libtpu: 0.0.40
codegen_flags: <defaults>
</compile_context>

<pallas_src>
import math

import jax
import jax.numpy as jnp
from jax.experimental import pallas as pl
from jax.experimental.pallas import tpu as pltpu


# ----------------------------------------------------------------------------
# Shared math (used by the Pallas kernel AND the numerics-matched reference).
# ----------------------------------------------------------------------------

def _softplus(x):
    # Branch-free, overflow-safe softplus: max(x,0) + log(1 + exp(-|x|)).
    # Uses only abs/max/exp/log (guaranteed Mosaic lowering; exp/log on EUP).
    return jnp.maximum(x, 0.0) + jnp.log(1.0 + jnp.exp(-jnp.abs(x)))


def _one_hot(t2d, n_steps):
    # t2d: [rows, 1] int32 -> [rows, n_steps] f32 one-hot (built from a lane iota).
    iota = jax.lax.broadcasted_iota(jnp.int32, (t2d.shape[0], n_steps), 1)
    return (iota == t2d).astype(jnp.float32)


def _fused_math(y, x, onehot, params):
    """y: [rows, y_dim] f32, x: [rows, x_dim] f32, onehot: [rows, S] f32.

    Returns [rows, out_pad] f32 (out_pad = y_dim rounded up to 128 lanes)."""
    (w1y, w1x, b1, s1, sh1, e1,
     w2,       b2, s2, sh2, e2,
     w3,       b3, s3, sh3, e3,
     w4,       b4) = params

    y_bf = y.astype(jnp.bfloat16)       # cast activations to bf16 once
    x_bf = x.astype(jnp.bfloat16)

    def mm(a_bf16, w_t):                # bf16 MXU matmul, f32 accumulation
        return jnp.dot(a_bf16, w_t, preferred_element_type=jnp.float32)

    def gather(e):                      # one-hot row-select on the MXU (exact, f32)
        return jnp.dot(onehot, e, preferred_element_type=jnp.float32)

    # lin1 on cat([y, x])  ==  y @ W1y^T + x @ W1x^T
    h = gather(e1) * (mm(y_bf, w1y) + mm(x_bf, w1x) + b1)
    h = h * s1 + sh1                            # unetnorm1 (eval-mode affine)
    h = _softplus(h)
    h = h * x                                   # y = y * x_embed (f32)
    h = gather(e2) * (mm(h.astype(jnp.bfloat16), w2) + b2)   # lin2
    h = h * s2 + sh2                            # unetnorm2
    h = _softplus(h)
    h = gather(e3) * (mm(h.astype(jnp.bfloat16), w3) + b3)   # lin3
    h = h * s3 + sh3                            # unetnorm3
    h = _softplus(h)
    return mm(h.astype(jnp.bfloat16), w4) + b4  # lin4 (lane-padded output)


# ----------------------------------------------------------------------------
# Pallas kernel
# ----------------------------------------------------------------------------

def _fused_kernel(t_ref, y_ref, x_ref,
                  w1y_ref, w1x_ref, b1_ref, s1_ref, sh1_ref, e1_ref,
                  w2_ref, b2_ref, s2_ref, sh2_ref, e2_ref,
                  w3_ref, b3_ref, s3_ref, sh3_ref, e3_ref,
                  w4_ref, b4_ref, o_ref):
    onehot = _one_hot(t_ref[...], e1_ref.shape[0])
    params = (w1y_ref[...], w1x_ref[...], b1_ref[...], s1_ref[...], sh1_ref[...], e1_ref[...],
              w2_ref[...], b2_ref[...], s2_ref[...], sh2_ref[...], e2_ref[...],
              w3_ref[...], b3_ref[...], s3_ref[...], sh3_ref[...], e3_ref[...],
              w4_ref[...], b4_ref[...])
    out = _fused_math(y_ref[...], x_ref[...], onehot, params)
    o_ref[...] = out.astype(o_ref.dtype)


# ----------------------------------------------------------------------------
# Wrapper
# ----------------------------------------------------------------------------

def _round_up(n, m):
    return -(-n // m) * m


def _prepare_constants(params, y_dim):
    """Pre-transpose weights to [in, out] (bf16), fold eval-mode BN into a
    per-feature affine, and zero-pad the final layer to a 128-lane output."""
    def bn_fold(p, eps=1e-5):
        g, b, mean, var = p
        scale = g / jnp.sqrt(var + eps)
        return scale.reshape(1, -1), (b - mean * scale).reshape(1, -1)

    s1, sh1 = bn_fold(params["bn1"])
    s2, sh2 = bn_fold(params["bn2"])
    s3, sh3 = bn_fold(params["bn3"])
    bf16 = jnp.bfloat16

    w1 = params["w1"]                                  # [x_dim, y_dim + x_dim]
    out_pad = _round_up(y_dim, 128)                    # lane-dense output width
    w4t = params["w4"].T.astype(bf16)                  # [x_dim, y_dim]
    b4 = params["b4"].reshape(1, -1)
    if out_pad != y_dim:
        w4t = jnp.pad(w4t, ((0, 0), (0, out_pad - y_dim)))
        b4 = jnp.pad(b4, ((0, 0), (0, out_pad - y_dim)))

    return (
        w1[:, :y_dim].T.astype(bf16),                  # W1 column block for y
        w1[:, y_dim:].T.astype(bf16),                  # W1 column block for x_embed
        params["b1"].reshape(1, -1), s1, sh1, params["e1"],
        params["w2"].T.astype(bf16),
        params["b2"].reshape(1, -1), s2, sh2, params["e2"],
        params["w3"].T.astype(bf16),
        params["b3"].reshape(1, -1), s3, sh3, params["e3"],
        w4t,
        b4,
    )


def conditional_model_forward(y, t, w, x_embed, params, *, block_b=256):
    """Fused Pallas forward for ConditionalModel (guidance=True, eval-mode BN).

    y:       [B, y_dim] f32
    t:       [B]        int32
    w:       [B, w_dim] f32   (self.norm(w) output is discarded by the model)
    x_embed: [B, x_dim] f32
    """
    del w  # norm(w) does not feed the returned value
    B, y_dim = y.shape
    x_dim = x_embed.shape[1]
    out_pad = _round_up(y_dim, 128)

    consts = list(_prepare_constants(params, y_dim))

    # Batch tiling: tile must be a multiple of 8 sublanes unless it spans the
    # whole (padded) batch.
    bm = min(max(8, (block_b // 8) * 8), _round_up(B, 8))
    b_pad = pl.cdiv(B, bm) * bm
    if b_pad != B:
        pad = b_pad - B
        y = jnp.pad(y, ((0, pad), (0, 0)))
        x_embed = jnp.pad(x_embed, ((0, pad), (0, 0)))
        t = jnp.pad(t, ((0, pad),))
    t2d = t.reshape(b_pad, 1).astype(jnp.int32)

    grid = (b_pad // bm,)
    in_specs = (
        [pl.BlockSpec((bm, 1), lambda i: (i, 0)),        # t
         pl.BlockSpec((bm, y_dim), lambda i: (i, 0)),    # y
         pl.BlockSpec((bm, x_dim), lambda i: (i, 0))]    # x_embed
        # constant block index -> weights / embeddings stay VMEM-resident
        + [pl.BlockSpec(c.shape, lambda i: (0, 0)) for c in consts]
    )
    out_spec = pl.BlockSpec((bm, out_pad), lambda i: (i, 0))

    const_bytes = sum(int(c.size) * c.dtype.itemsize for c in consts)
    # double-buffered io tiles (t, y, x in; padded out)
    tile_bytes = 2 * bm * (1 + y_dim + x_dim + out_pad) * 4
    vmem_limit = int(min(64 * 2**20, max(32 * 2**20, 2 * (const_bytes + tile_bytes))))

    out = pl.pallas_call(
        _fused_kernel,
        out_shape=jax.ShapeDtypeStruct((b_pad, out_pad), jnp.float32),
        grid=grid,
        in_specs=in_specs,
        out_specs=out_spec,
        compiler_params=pltpu.CompilerParams(
            dimension_semantics=("parallel",),
            vmem_limit_bytes=vmem_limit,
        ),
    )(t2d, y, x_embed, *consts)
    return out[:B, :y_dim]


# ----------------------------------------------------------------------------
# Parameter init (mirrors the PyTorch module) and references
# ----------------------------------------------------------------------------

def init_params(key, *, y_dim, x_dim, n_steps):
    """nn.Linear: U(-1/sqrt(fan_in), 1/sqrt(fan_in)); embeddings: U(0,1);
    BatchNorms: randomized eval-mode statistics (as if trained)."""
    S = n_steps + 1  # module does n_steps = n_steps + 1
    ks = jax.random.split(key, 16)

    def lin(kw, kb, fan_in, fan_out):
        bound = 1.0 / math.sqrt(fan_in)
        wgt = jax.random.uniform(kw, (fan_out, fan_in), jnp.float32, -bound, bound)
        b = jax.random.uniform(kb, (fan_out,), jnp.float32, -bound, bound)
        return wgt, b

    def bn(k, dim):
        k1, k2, k3, k4 = jax.random.split(k, 4)
        g = jax.random.uniform(k1, (dim,), jnp.float32, 0.5, 1.5)
        b = 0.1 * jax.random.normal(k2, (dim,), jnp.float32)
        mean = 0.1 * jax.random.normal(k3, (dim,), jnp.float32)
        var = jax.random.uniform(k4, (dim,), jnp.float32, 0.5, 1.5)
        return (g, b, mean, var)

    w1, b1 = lin(ks[0], ks[1], y_dim + x_dim, x_dim)
    w2, b2 = lin(ks[2], ks[3], x_dim, x_dim)
    w3, b3 = lin(ks[4], ks[5], x_dim, x_dim)
    w4, b4 = lin(ks[6], ks[7], x_dim, y_dim)
    e1 = jax.random.uniform(ks[8], (S, x_dim), jnp.float32)
    e2 = jax.random.uniform(ks[9], (S, x_dim), jnp.float32)
    e3 = jax.random.uniform(ks[10], (S, x_dim), jnp.float32)
    return dict(w1=w1, b1=b1, w2=w2, b2=b2, w3=w3, b3=b3, w4=w4, b4=b4,
                e1=e1, e2=e2, e3=e3,
                bn1=bn(ks[11], x_dim), bn2=bn(ks[12], x_dim), bn3=bn(ks[13], x_dim))


def _reference_f32(y, t, x_embed, params):
    """Independent, direct f32 translation of ConditionalModel.forward (eval BN)."""
    def bn(h, p, eps=1e-5):
        g, b, mean, var = p
        return (h - mean) / jnp.sqrt(var + eps) * g + b

    def cond_linear(h, wgt, b, e):
        return e[t] * (h @ wgt.T + b)

    h = jnp.concatenate([y, x_embed], axis=-1)
    h = cond_linear(h, params["w1"], params["b1"], params["e1"])
    h = jax.nn.softplus(bn(h, params["bn1"]))
    h = h * x_embed
    h = cond_linear(h, params["w2"], params["b2"], params["e2"])
    h = jax.nn.softplus(bn(h, params["bn2"]))
    h = cond_linear(h, params["w3"], params["b3"], params["e3"])
    h = jax.nn.softplus(bn(h, params["bn3"]))
    return h @ params["w4"].T + params["b4"]


def _reference_bf16_matched(y, t, x_embed, params):
    """Pure-JAX reference with the same bf16-matmul numerics as the kernel."""
    y_dim = y.shape[1]
    consts = _prepare_constants(params, y_dim)
    onehot = _one_hot(t.reshape(-1, 1).astype(jnp.int32), params["e1"].shape[0])
    return _fused_math(y, x_embed, onehot, consts)[:, :y_dim]


# ----------------------------------------------------------------------------
# Demo / test
# ----------------------------------------------------------------------------

if __name__ == "__main__":
    # Small, consistent shapes: w_dim == x_dim (required by the module's BN shapes),
    # x_dim a multiple of 128 for lane-dense intermediates, B not a multiple of
    # the batch tile to exercise the padding path and a >1-step grid.
    B, y_dim, x_dim, n_steps = 72, 10, 256, 20

    key = jax.random.PRNGKey(0)
    kp, ky, kt, kw, kx = jax.random.split(key, 5)
    params = init_params(kp, y_dim=y_dim, x_dim=x_dim, n_steps=n_steps)

    y = jax.random.normal(ky, (B, y_dim), jnp.float32)
    t = jax.random.randint(kt, (B,), 0, n_steps + 1, jnp.int32)
    w = jax.random.normal(kw, (B, x_dim), jnp.float32)        # unused by the output
    x_embed = jax.random.normal(kx, (B, x_dim), jnp.float32)

    out = conditional_model_forward(y, t, w, x_embed, params, block_b=32)
    out = jax.block_until_ready(out)
    assert out.shape == (B, y_dim)

    # Tight check vs a pure-JAX reference with identical bf16-matmul numerics
    # (verifies the Pallas plumbing: tiling, fused gather, padded output, epilogues).
    ref_matched = _reference_bf16_matched(y, t, x_embed, params)
    assert jnp.allclose(out, ref_matched, atol=1e-3, rtol=1e-3), \
        "mismatch vs bf16-matched reference"

    # Loose check vs the independent full-f32 reference (budget for bf16 MXU inputs).
    ref_f32 = _reference_f32(y, t, x_embed, params)
    assert jnp.allclose(out, ref_f32, atol=0.1, rtol=0.1), "mismatch vs f32 reference"

    print("KERNEL_OK")
</pallas_src>

<mosaic_0001>
module attributes {stable_mosaic.version = 11 : i64} {
  func.func @_fused_kernel(%arg0: i32, %arg1: memref<32x1xi32, #tpu.memory_space<vmem>>, %arg2: memref<32x10xf32, #tpu.memory_space<vmem>>, %arg3: memref<32x256xf32, #tpu.memory_space<vmem>>, %arg4: memref<10x256xbf16, #tpu.memory_space<vmem>>, %arg5: memref<256x256xbf16, #tpu.memory_space<vmem>>, %arg6: memref<1x256xf32, #tpu.memory_space<vmem>>, %arg7: memref<1x256xf32, #tpu.memory_space<vmem>>, %arg8: memref<1x256xf32, #tpu.memory_space<vmem>>, %arg9: memref<21x256xf32, #tpu.memory_space<vmem>>, %arg10: memref<256x256xbf16, #tpu.memory_space<vmem>>, %arg11: memref<1x256xf32, #tpu.memory_space<vmem>>, %arg12: memref<1x256xf32, #tpu.memory_space<vmem>>, %arg13: memref<1x256xf32, #tpu.memory_space<vmem>>, %arg14: memref<21x256xf32, #tpu.memory_space<vmem>>, %arg15: memref<256x256xbf16, #tpu.memory_space<vmem>>, %arg16: memref<1x256xf32, #tpu.memory_space<vmem>>, %arg17: memref<1x256xf32, #tpu.memory_space<vmem>>, %arg18: memref<1x256xf32, #tpu.memory_space<vmem>>, %arg19: memref<21x256xf32, #tpu.memory_space<vmem>>, %arg20: memref<256x128xbf16, #tpu.memory_space<vmem>>, %arg21: memref<1x128xf32, #tpu.memory_space<vmem>>, %arg22: memref<32x128xf32, #tpu.memory_space<vmem>>) attributes {dimension_semantics = [#tpu.dimension_semantics<parallel>], iteration_bounds = array<i64: 3>, scalar_prefetch = 0 : i64, scratch_operands = 0 : i64, tpu.core_type = #tpu.core_type<tc>, window_params = [{transform_indices = @transform_0, window_bounds = array<i64: 32, 1>}, {transform_indices = @transform_1, window_bounds = array<i64: 32, 10>}, {transform_indices = @transform_2, window_bounds = array<i64: 32, 256>}, {pipeline_mode = #tpu.pipeline_mode<synchronous>, transform_indices = @transform_3, window_bounds = array<i64: 10, 256>}, {pipeline_mode = #tpu.pipeline_mode<synchronous>, transform_indices = @transform_4, window_bounds = array<i64: 256, 256>}, {pipeline_mode = #tpu.pipeline_mode<synchronous>, transform_indices = @transform_5, window_bounds = array<i64: 1, 256>}, {pipeline_mode = #tpu.pipeline_mode<synchronous>, transform_indices = @transform_6, window_bounds = array<i64: 1, 256>}, {pipeline_mode = #tpu.pipeline_mode<synchronous>, transform_indices = @transform_7, window_bounds = array<i64: 1, 256>}, {pipeline_mode = #tpu.pipeline_mode<synchronous>, transform_indices = @transform_8, window_bounds = array<i64: 21, 256>}, {pipeline_mode = #tpu.pipeline_mode<synchronous>, transform_indices = @transform_9, window_bounds = array<i64: 256, 256>}, {pipeline_mode = #tpu.pipeline_mode<synchronous>, transform_indices = @transform_10, window_bounds = array<i64: 1, 256>}, {pipeline_mode = #tpu.pipeline_mode<synchronous>, transform_indices = @transform_11, window_bounds = array<i64: 1, 256>}, {pipeline_mode = #tpu.pipeline_mode<synchronous>, transform_indices = @transform_12, window_bounds = array<i64: 1, 256>}, {pipeline_mode = #tpu.pipeline_mode<synchronous>, transform_indices = @transform_13, window_bounds = array<i64: 21, 256>}, {pipeline_mode = #tpu.pipeline_mode<synchronous>, transform_indices = @transform_14, window_bounds = array<i64: 256, 256>}, {pipeline_mode = #tpu.pipeline_mode<synchronous>, transform_indices = @transform_15, window_bounds = array<i64: 1, 256>}, {pipeline_mode = #tpu.pipeline_mode<synchronous>, transform_indices = @transform_16, window_bounds = array<i64: 1, 256>}, {pipeline_mode = #tpu.pipeline_mode<synchronous>, transform_indices = @transform_17, window_bounds = array<i64: 1, 256>}, {pipeline_mode = #tpu.pipeline_mode<synchronous>, transform_indices = @transform_18, window_bounds = array<i64: 21, 256>}, {pipeline_mode = #tpu.pipeline_mode<synchronous>, transform_indices = @transform_19, window_bounds = array<i64: 256, 128>}, {pipeline_mode = #tpu.pipeline_mode<synchronous>, transform_indices = @transform_20, window_bounds = array<i64: 1, 128>}, {transform_indices = @transform_21, window_bounds = array<i64: 32, 128>}]} {
    %c0 = arith.constant 0 : index
    %c0_0 = arith.constant 0 : index
    %0 = vector.load %arg1[%c0, %c0_0] : memref<32x1xi32, #tpu.memory_space<vmem>>, vector<32x1xi32>
    %1 = tpu.iota {dimensions = array<i32: 1>} : vector<32x21xi32>
    %2 = vector.broadcast %0 : vector<32x1xi32> to vector<32x21xi32>
    %3 = arith.cmpi eq, %1, %2 : vector<32x21xi32>
    %4 = arith.extui %3 : vector<32x21xi1> to vector<32x21xi32>
    %5 = arith.sitofp %4 : vector<32x21xi32> to vector<32x21xf32>
    %c0_1 = arith.constant 0 : index
    %c0_2 = arith.constant 0 : index
    %6 = vector.load %arg4[%c0_1, %c0_2] : memref<10x256xbf16, #tpu.memory_space<vmem>>, vector<10x256xbf16>
    %c0_3 = arith.constant 0 : index
    %c0_4 = arith.constant 0 : index
    %7 = vector.load %arg5[%c0_3, %c0_4] : memref<256x256xbf16, #tpu.memory_space<vmem>>, vector<256x256xbf16>
    %c0_5 = arith.constant 0 : index
    %c0_6 = arith.constant 0 : index
    %8 = vector.load %arg6[%c0_5, %c0_6] : memref<1x256xf32, #tpu.memory_space<vmem>>, vector<1x256xf32>
    %c0_7 = arith.constant 0 : index
    %c0_8 = arith.constant 0 : index
    %9 = vector.load %arg7[%c0_7, %c0_8] : memref<1x256xf32, #tpu.memory_space<vmem>>, vector<1x256xf32>
    %c0_9 = arith.constant 0 : index
    %c0_10 = arith.constant 0 : index
    %10 = vector.load %arg8[%c0_9, %c0_10] : memref<1x256xf32, #tpu.memory_space<vmem>>, vector<1x256xf32>
    %c0_11 = arith.constant 0 : index
    %c0_12 = arith.constant 0 : index
    %11 = vector.load %arg9[%c0_11, %c0_12] : memref<21x256xf32, #tpu.memory_space<vmem>>, vector<21x256xf32>
    %c0_13 = arith.constant 0 : index
    %c0_14 = arith.constant 0 : index
    %12 = vector.load %arg10[%c0_13, %c0_14] : memref<256x256xbf16, #tpu.memory_space<vmem>>, vector<256x256xbf16>
    %c0_15 = arith.constant 0 : index
    %c0_16 = arith.constant 0 : index
    %13 = vector.load %arg11[%c0_15, %c0_16] : memref<1x256xf32, #tpu.memory_space<vmem>>, vector<1x256xf32>
    %c0_17 = arith.constant 0 : index
    %c0_18 = arith.constant 0 : index
    %14 = vector.load %arg12[%c0_17, %c0_18] : memref<1x256xf32, #tpu.memory_space<vmem>>, vector<1x256xf32>
    %c0_19 = arith.constant 0 : index
    %c0_20 = arith.constant 0 : index
    %15 = vector.load %arg13[%c0_19, %c0_20] : memref<1x256xf32, #tpu.memory_space<vmem>>, vector<1x256xf32>
    %c0_21 = arith.constant 0 : index
    %c0_22 = arith.constant 0 : index
    %16 = vector.load %arg14[%c0_21, %c0_22] : memref<21x256xf32, #tpu.memory_space<vmem>>, vector<21x256xf32>
    %c0_23 = arith.constant 0 : index
    %c0_24 = arith.constant 0 : index
    %17 = vector.load %arg15[%c0_23, %c0_24] : memref<256x256xbf16, #tpu.memory_space<vmem>>, vector<256x256xbf16>
    %c0_25 = arith.constant 0 : index
    %c0_26 = arith.constant 0 : index
    %18 = vector.load %arg16[%c0_25, %c0_26] : memref<1x256xf32, #tpu.memory_space<vmem>>, vector<1x256xf32>
    %c0_27 = arith.constant 0 : index
    %c0_28 = arith.constant 0 : index
    %19 = vector.load %arg17[%c0_27, %c0_28] : memref<1x256xf32, #tpu.memory_space<vmem>>, vector<1x256xf32>
    %c0_29 = arith.constant 0 : index
    %c0_30 = arith.constant 0 : index
    %20 = vector.load %arg18[%c0_29, %c0_30] : memref<1x256xf32, #tpu.memory_space<vmem>>, vector<1x256xf32>
    %c0_31 = arith.constant 0 : index
    %c0_32 = arith.constant 0 : index
    %21 = vector.load %arg19[%c0_31, %c0_32] : memref<21x256xf32, #tpu.memory_space<vmem>>, vector<21x256xf32>
    %c0_33 = arith.constant 0 : index
    %c0_34 = arith.constant 0 : index
    %22 = vector.load %arg20[%c0_33, %c0_34] : memref<256x128xbf16, #tpu.memory_space<vmem>>, vector<256x128xbf16>
    %c0_35 = arith.constant 0 : index
    %c0_36 = arith.constant 0 : index
    %23 = vector.load %arg21[%c0_35, %c0_36] : memref<1x128xf32, #tpu.memory_space<vmem>>, vector<1x128xf32>
    %c0_37 = arith.constant 0 : index
    %c0_38 = arith.constant 0 : index
    %24 = vector.load %arg2[%c0_37, %c0_38] : memref<32x10xf32, #tpu.memory_space<vmem>>, vector<32x10xf32>
    %c0_39 = arith.constant 0 : index
    %c0_40 = arith.constant 0 : index
    %25 = vector.load %arg3[%c0_39, %c0_40] : memref<32x256xf32, #tpu.memory_space<vmem>>, vector<32x256xf32>
    %26 = arith.truncf %24 : vector<32x10xf32> to vector<32x10xbf16>
    %27 = arith.truncf %25 : vector<32x256xf32> to vector<32x256xbf16>
    %cst = arith.constant dense<0.000000e+00> : vector<32x256xf32>
    %28 = tpu.matmul %5, %11, %cst {dimension_numbers = #tpu.dot_dimension_numbers<[1], [0], [0], [1], [0, 0, 1, 1], [], []>} : vector<32x21xf32>, vector<21x256xf32>, vector<32x256xf32> -> vector<32x256xf32>
    %cst_41 = arith.constant dense<0.000000e+00> : vector<32x256xf32>
    %29 = tpu.matmul %26, %6, %cst_41 {dimension_numbers = #tpu.dot_dimension_numbers<[1], [0], [0], [1], [0, 0, 1, 1], [], []>} : vector<32x10xbf16>, vector<10x256xbf16>, vector<32x256xf32> -> vector<32x256xf32>
    %cst_42 = arith.constant dense<0.000000e+00> : vector<32x256xf32>
    %30 = tpu.matmul %27, %7, %cst_42 {dimension_numbers = #tpu.dot_dimension_numbers<[1], [0], [0], [1], [0, 0, 1, 1], [], []>} : vector<32x256xbf16>, vector<256x256xbf16>, vector<32x256xf32> -> vector<32x256xf32>
    %31 = arith.addf %29, %30 : vector<32x256xf32>
    %32 = vector.broadcast %8 : vector<1x256xf32> to vector<32x256xf32>
    %33 = arith.addf %31, %32 : vector<32x256xf32>
    %34 = arith.mulf %28, %33 : vector<32x256xf32>
    %35 = vector.broadcast %9 : vector<1x256xf32> to vector<32x256xf32>
    %36 = arith.mulf %34, %35 : vector<32x256xf32>
    %37 = vector.broadcast %10 : vector<1x256xf32> to vector<32x256xf32>
    %38 = arith.addf %36, %37 : vector<32x256xf32>
    %cst_43 = arith.constant 0.000000e+00 : f32
    %39 = vector.broadcast %cst_43 : f32 to vector<32x256xf32>
    %40 = arith.maximumf %38, %39 : vector<32x256xf32>
    %41 = math.absf %38 : vector<32x256xf32>
    %cst_44 = arith.constant 0.000000e+00 : f32
    %42 = vector.broadcast %cst_44 : f32 to vector<32x256xf32>
    %43 = arith.subf %42, %41 : vector<32x256xf32>
    %44 = math.exp %43 : vector<32x256xf32>
    %cst_45 = arith.constant 1.000000e+00 : f32
    %45 = vector.broadcast %cst_45 : f32 to vector<32x256xf32>
    %46 = arith.addf %45, %44 : vector<32x256xf32>
    %47 = math.log %46 : vector<32x256xf32>
    %48 = arith.addf %40, %47 : vector<32x256xf32>
    %49 = arith.mulf %48, %25 : vector<32x256xf32>
    %cst_46 = arith.constant dense<0.000000e+00> : vector<32x256xf32>
    %50 = tpu.matmul %5, %16, %cst_46 {dimension_numbers = #tpu.dot_dimension_numbers<[1], [0], [0], [1], [0, 0, 1, 1], [], []>} : vector<32x21xf32>, vector<21x256xf32>, vector<32x256xf32> -> vector<32x256xf32>
    %51 = arith.truncf %49 : vector<32x256xf32> to vector<32x256xbf16>
    %cst_47 = arith.constant dense<0.000000e+00> : vector<32x256xf32>
    %52 = tpu.matmul %51, %12, %cst_47 {dimension_numbers = #tpu.dot_dimension_numbers<[1], [0], [0], [1], [0, 0, 1, 1], [], []>} : vector<32x256xbf16>, vector<256x256xbf16>, vector<32x256xf32> -> vector<32x256xf32>
    %53 = vector.broadcast %13 : vector<1x256xf32> to vector<32x256xf32>
    %54 = arith.addf %52, %53 : vector<32x256xf32>
    %55 = arith.mulf %50, %54 : vector<32x256xf32>
    %56 = vector.broadcast %14 : vector<1x256xf32> to vector<32x256xf32>
    %57 = arith.mulf %55, %56 : vector<32x256xf32>
    %58 = vector.broadcast %15 : vector<1x256xf32> to vector<32x256xf32>
    %59 = arith.addf %57, %58 : vector<32x256xf32>
    %cst_48 = arith.constant 0.000000e+00 : f32
    %60 = vector.broadcast %cst_48 : f32 to vector<32x256xf32>
    %61 = arith.maximumf %59, %60 : vector<32x256xf32>
    %62 = math.absf %59 : vector<32x256xf32>
    %cst_49 = arith.constant 0.000000e+00 : f32
    %63 = vector.broadcast %cst_49 : f32 to vector<32x256xf32>
    %64 = arith.subf %63, %62 : vector<32x256xf32>
    %65 = math.exp %64 : vector<32x256xf32>
    %cst_50 = arith.constant 1.000000e+00 : f32
    %66 = vector.broadcast %cst_50 : f32 to vector<32x256xf32>
    %67 = arith.addf %66, %65 : vector<32x256xf32>
    %68 = math.log %67 : vector<32x256xf32>
    %69 = arith.addf %61, %68 : vector<32x256xf32>
    %cst_51 = arith.constant dense<0.000000e+00> : vector<32x256xf32>
    %70 = tpu.matmul %5, %21, %cst_51 {dimension_numbers = #tpu.dot_dimension_numbers<[1], [0], [0], [1], [0, 0, 1, 1], [], []>} : vector<32x21xf32>, vector<21x256xf32>, vector<32x256xf32> -> vector<32x256xf32>
    %71 = arith.truncf %69 : vector<32x256xf32> to vector<32x256xbf16>
    %cst_52 = arith.constant dense<0.000000e+00> : vector<32x256xf32>
    %72 = tpu.matmul %71, %17, %cst_52 {dimension_numbers = #tpu.dot_dimension_numbers<[1], [0], [0], [1], [0, 0, 1, 1], [], []>} : vector<32x256xbf16>, vector<256x256xbf16>, vector<32x256xf32> -> vector<32x256xf32>
    %73 = vector.broadcast %18 : vector<1x256xf32> to vector<32x256xf32>
    %74 = arith.addf %72, %73 : vector<32x256xf32>
    %75 = arith.mulf %70, %74 : vector<32x256xf32>
    %76 = vector.broadcast %19 : vector<1x256xf32> to vector<32x256xf32>
    %77 = arith.mulf %75, %76 : vector<32x256xf32>
    %78 = vector.broadcast %20 : vector<1x256xf32> to vector<32x256xf32>
    %79 = arith.addf %77, %78 : vector<32x256xf32>
    %cst_53 = arith.constant 0.000000e+00 : f32
    %80 = vector.broadcast %cst_53 : f32 to vector<32x256xf32>
    %81 = arith.maximumf %79, %80 : vector<32x256xf32>
    %82 = math.absf %79 : vector<32x256xf32>
    %cst_54 = arith.constant 0.000000e+00 : f32
    %83 = vector.broadcast %cst_54 : f32 to vector<32x256xf32>
    %84 = arith.subf %83, %82 : vector<32x256xf32>
    %85 = math.exp %84 : vector<32x256xf32>
    %cst_55 = arith.constant 1.000000e+00 : f32
    %86 = vector.broadcast %cst_55 : f32 to vector<32x256xf32>
    %87 = arith.addf %86, %85 : vector<32x256xf32>
    %88 = math.log %87 : vector<32x256xf32>
    %89 = arith.addf %81, %88 : vector<32x256xf32>
    %90 = arith.truncf %89 : vector<32x256xf32> to vector<32x256xbf16>
    %cst_56 = arith.constant dense<0.000000e+00> : vector<32x128xf32>
    %91 = tpu.matmul %90, %22, %cst_56 {dimension_numbers = #tpu.dot_dimension_numbers<[1], [0], [0], [1], [0, 0, 1, 1], [], []>} : vector<32x256xbf16>, vector<256x128xbf16>, vector<32x128xf32> -> vector<32x128xf32>
    %92 = vector.broadcast %23 : vector<1x128xf32> to vector<32x128xf32>
    %93 = arith.addf %91, %92 : vector<32x128xf32>
    %c0_57 = arith.constant 0 : index
    %c0_58 = arith.constant 0 : index
    %94 = vector.load %arg22[%c0_57, %c0_58] : memref<32x128xf32, #tpu.memory_space<vmem>>, vector<32x128xf32>
    tpu.vector_store %arg22[%c0_57, %c0_58], %93 {strides = array<i32>} : memref<32x128xf32, #tpu.memory_space<vmem>>, vector<32x128xf32>,
    return
  }
  func.func @transform_0(%arg0: i32) -> (i32, i32) {
    %c0_i32 = arith.constant 0 : i32
    %c0_i32_0 = arith.constant 0 : i32
    return %arg0, %c0_i32 : i32, i32
  }
  func.func @transform_1(%arg0: i32) -> (i32, i32) {
    %c0_i32 = arith.constant 0 : i32
    %c0_i32_0 = arith.constant 0 : i32
    return %arg0, %c0_i32 : i32, i32
  }
  func.func @transform_2(%arg0: i32) -> (i32, i32) {
    %c0_i32 = arith.constant 0 : i32
    %c0_i32_0 = arith.constant 0 : i32
    return %arg0, %c0_i32 : i32, i32
  }
  func.func @transform_3(%arg0: i32) -> (i32, i32) {
    %c0_i32 = arith.constant 0 : i32
    %c0_i32_0 = arith.constant 0 : i32
    %c0_i32_1 = arith.constant 0 : i32
    return %c0_i32, %c0_i32_0 : i32, i32
  }
  func.func @transform_4(%arg0: i32) -> (i32, i32) {
    %c0_i32 = arith.constant 0 : i32
    %c0_i32_0 = arith.constant 0 : i32
    %c0_i32_1 = arith.constant 0 : i32
    return %c0_i32, %c0_i32_0 : i32, i32
  }
  func.func @transform_5(%arg0: i32) -> (i32, i32) {
    %c0_i32 = arith.constant 0 : i32
    %c0_i32_0 = arith.constant 0 : i32
    %c0_i32_1 = arith.constant 0 : i32
    return %c0_i32, %c0_i32_0 : i32, i32
  }
  func.func @transform_6(%arg0: i32) -> (i32, i32) {
    %c0_i32 = arith.constant 0 : i32
    %c0_i32_0 = arith.constant 0 : i32
    %c0_i32_1 = arith.constant 0 : i32
    return %c0_i32, %c0_i32_0 : i32, i32
  }
  func.func @transform_7(%arg0: i32) -> (i32, i32) {
    %c0_i32 = arith.constant 0 : i32
    %c0_i32_0 = arith.constant 0 : i32
    %c0_i32_1 = arith.constant 0 : i32
    return %c0_i32, %c0_i32_0 : i32, i32
  }
  func.func @transform_8(%arg0: i32) -> (i32, i32) {
    %c0_i32 = arith.constant 0 : i32
    %c0_i32_0 = arith.constant 0 : i32
    %c0_i32_1 = arith.constant 0 : i32
    return %c0_i32, %c0_i32_0 : i32, i32
  }
  func.func @transform_9(%arg0: i32) -> (i32, i32) {
    %c0_i32 = arith.constant 0 : i32
    %c0_i32_0 = arith.constant 0 : i32
    %c0_i32_1 = arith.constant 0 : i32
    return %c0_i32, %c0_i32_0 : i32, i32
  }
  func.func @transform_10(%arg0: i32) -> (i32, i32) {
    %c0_i32 = arith.constant 0 : i32
    %c0_i32_0 = arith.constant 0 : i32
    %c0_i32_1 = arith.constant 0 : i32
    return %c0_i32, %c0_i32_0 : i32, i32
  }
  func.func @transform_11(%arg0: i32) -> (i32, i32) {
    %c0_i32 = arith.constant 0 : i32
    %c0_i32_0 = arith.constant 0 : i32
    %c0_i32_1 = arith.constant 0 : i32
    return %c0_i32, %c0_i32_0 : i32, i32
  }
  func.func @transform_12(%arg0: i32) -> (i32, i32) {
    %c0_i32 = arith.constant 0 : i32
    %c0_i32_0 = arith.constant 0 : i32
    %c0_i32_1 = arith.constant 0 : i32
    return %c0_i32, %c0_i32_0 : i32, i32
  }
  func.func @transform_13(%arg0: i32) -> (i32, i32) {
    %c0_i32 = arith.constant 0 : i32
    %c0_i32_0 = arith.constant 0 : i32
    %c0_i32_1 = arith.constant 0 : i32
    return %c0_i32, %c0_i32_0 : i32, i32
  }
  func.func @transform_14(%arg0: i32) -> (i32, i32) {
    %c0_i32 = arith.constant 0 : i32
    %c0_i32_0 = arith.constant 0 : i32
    %c0_i32_1 = arith.constant 0 : i32
    return %c0_i32, %c0_i32_0 : i32, i32
  }
  func.func @transform_15(%arg0: i32) -> (i32, i32) {
    %c0_i32 = arith.constant 0 : i32
    %c0_i32_0 = arith.constant 0 : i32
    %c0_i32_1 = arith.constant 0 : i32
    return %c0_i32, %c0_i32_0 : i32, i32
  }
  func.func @transform_16(%arg0: i32) -> (i32, i32) {
    %c0_i32 = arith.constant 0 : i32
    %c0_i32_0 = arith.constant 0 : i32
    %c0_i32_1 = arith.constant 0 : i32
    return %c0_i32, %c0_i32_0 : i32, i32
  }
  func.func @transform_17(%arg0: i32) -> (i32, i32) {
    %c0_i32 = arith.constant 0 : i32
    %c0_i32_0 = arith.constant 0 : i32
    %c0_i32_1 = arith.constant 0 : i32
    return %c0_i32, %c0_i32_0 : i32, i32
  }
  func.func @transform_18(%arg0: i32) -> (i32, i32) {
    %c0_i32 = arith.constant 0 : i32
    %c0_i32_0 = arith.constant 0 : i32
    %c0_i32_1 = arith.constant 0 : i32
    return %c0_i32, %c0_i32_0 : i32, i32
  }
  func.func @transform_19(%arg0: i32) -> (i32, i32) {
    %c0_i32 = arith.constant 0 : i32
    %c0_i32_0 = arith.constant 0 : i32
    %c0_i32_1 = arith.constant 0 : i32
    return %c0_i32, %c0_i32_0 : i32, i32
  }
  func.func @transform_20(%arg0: i32) -> (i32, i32) {
    %c0_i32 = arith.constant 0 : i32
    %c0_i32_0 = arith.constant 0 : i32
    %c0_i32_1 = arith.constant 0 : i32
    return %c0_i32, %c0_i32_0 : i32, i32
  }
  func.func @transform_21(%arg0: i32) -> (i32, i32) {
    %c0_i32 = arith.constant 0 : i32
    %c0_i32_0 = arith.constant 0 : i32
    return %arg0, %c0_i32 : i32, i32
  }
}

</mosaic_0001>

<llo_original>
// kernel: tpu_custom_call.1
$region0: #{tpu_custom_call.1}
  #allocation0 [shape = 'u32[]', space=smem, size = 0x4, offset = 0x4, fixed_abs, tag = 'smem constant byte address 0x4 - core index']
  #allocation1 [shape = 'u32[144,128]{1,0:T(1,128)}', space=vmem, size = 0x12000, scoped, tag = 'internal scratch']
  %s0 = inlined_call_operand.vmem [shape: s32[96,1], index: 0, kind: input, shape index: {}]
  %s1 = inlined_call_operand.vmem [shape: f32[96,10], index: 1, kind: input, shape index: {}]
  %s2 = inlined_call_operand.hbm [shape: f32[96,256], index: 2, kind: input, shape index: {}]
  %s3 = inlined_call_operand.hbm [shape: bf16[10,256], index: 3, kind: input, shape index: {}]
  %s4 = inlined_call_operand.hbm [shape: bf16[256,256], index: 4, kind: input, shape index: {}]
  %s5 = inlined_call_operand.vmem [shape: f32[1,256], index: 5, kind: input, shape index: {}]
  %s6 = inlined_call_operand.vmem [shape: f32[1,256], index: 6, kind: input, shape index: {}]
  %s7 = inlined_call_operand.hbm [shape: f32[1,256], index: 7, kind: input, shape index: {}]
  %s8 = inlined_call_operand.hbm [shape: f32[21,256], index: 8, kind: input, shape index: {}]
  %s9 = inlined_call_operand.hbm [shape: bf16[256,256], index: 9, kind: input, shape index: {}]
  %s10 = inlined_call_operand.hbm [shape: f32[1,256], index: 10, kind: input, shape index: {}]
  %s11 = inlined_call_operand.hbm [shape: f32[1,256], index: 11, kind: input, shape index: {}]
  %s12 = inlined_call_operand.hbm [shape: f32[1,256], index: 12, kind: input, shape index: {}]
  %s13 = inlined_call_operand.hbm [shape: f32[21,256], index: 13, kind: input, shape index: {}]
  %s14 = inlined_call_operand.vmem [shape: bf16[256,256], index: 14, kind: input, shape index: {}]
  %s15 = inlined_call_operand.vmem [shape: f32[1,256], index: 15, kind: input, shape index: {}]
  %s16 = inlined_call_operand.vmem [shape: f32[1,256], index: 16, kind: input, shape index: {}]
  %s17 = inlined_call_operand.vmem [shape: f32[1,256], index: 17, kind: input, shape index: {}]
  %s18 = inlined_call_operand.hbm [shape: f32[21,256], index: 18, kind: input, shape index: {}]
  %s19 = inlined_call_operand.hbm [shape: bf16[256,128], index: 19, kind: input, shape index: {}]
  %s20 = inlined_call_operand.vmem [shape: f32[1,128], index: 20, kind: input, shape index: {}]
  %s21 = inlined_call_operand.hbm [shape: f32[96,128], index: 21, kind: output, shape index: {}]
  %s22 = sld [smem:[#allocation0]]
  $region165: #{tpu_custom_call.1} parent=0
    _
  %s24 = ssub.s32 1, %s22
  %s25 = scalar_select 0, %s24, %s22
  $region1: #{tpu_custom_call.1} parent=0
    #allocation2 [shape = 'u8[65536]{0}', space=vmem, size = 0x10000, scoped, tag = 'input window, operand 2']
    #allocation3 [shape = 's32[2]{0}', space=sflag, size = 0x8, scoped, tag = 'scoped memory for tpu_custom_call.1']
    #allocation4 [shape = 's32[2]{0}', space=sflag, size = 0x8, scoped, tag = 'scoped memory for tpu_custom_call.1']
    #allocation5 [shape = 'u8[8192]{0}', space=vmem, size = 0x2000, scoped, tag = 'input window, operand 3, single buffered']
    #allocation6 [shape = 's32[1]{0}', space=sflag, size = 0x4, scoped, tag = 'scoped memory for tpu_custom_call.1']
    #allocation7 [shape = 'u8[131072]{0}', space=vmem, size = 0x20000, scoped, tag = 'input window, operand 4, single buffered']
    #allocation8 [shape = 'u8[1024]{0}', space=vmem, size = 0x400, scoped, tag = 'input window, operand 7, single buffered']
    #allocation9 [shape = 's32[1]{0}', space=sflag, size = 0x4, scoped, tag = 'scoped memory for tpu_custom_call.1']
    #allocation10 [shape = 'u8[24576]{0}', space=vmem, size = 0x6000, scoped, tag = 'input window, operand 8, single buffered']
    #allocation11 [shape = 'u8[131072]{0}', space=vmem, size = 0x20000, scoped, tag = 'input window, operand 9, single buffered']
    #allocation12 [shape = 's32[1]{0}', space=sflag, size = 0x4, scoped, tag = 'scoped memory for tpu_custom_call.1']
    #allocation13 [shape = 'u8[1024]{0}', space=vmem, size = 0x400, scoped, tag = 'input window, operand 10, single buffered']
    #allocation14 [shape = 'u8[1024]{0}', space=vmem, size = 0x400, scoped, tag = 'input window, operand 11, single buffered']
    #allocation15 [shape = 's32[1]{0}', space=sflag, size = 0x4, scoped, tag = 'scoped memory for tpu_custom_call.1']
    #allocation16 [shape = 'u8[1024]{0}', space=vmem, size = 0x400, scoped, tag = 'input window, operand 12, single buffered']
    #allocation17 [shape = 'u8[24576]{0}', space=vmem, size = 0x6000, scoped, tag = 'input window, operand 13, single buffered']
    #allocation18 [shape = 's32[1]{0}', space=sflag, size = 0x4, scoped, tag = 'scoped memory for tpu_custom_call.1']
    #allocation19 [shape = 'u8[24576]{0}', space=vmem, size = 0x6000, scoped, tag = 'input window, operand 18, single buffered']
    #allocation20 [shape = 'u8[65536]{0}', space=vmem, size = 0x10000, scoped, tag = 'input window, operand 19, single buffered']
    #allocation21 [shape = 's32[1]{0}', space=sflag, size = 0x4, scoped, tag = 'scoped memory for tpu_custom_call.1']
    #allocation22 [shape = 'u8[32768]{0}', space=vmem, size = 0x8000, scoped, tag = 'output window, operand 0']
    %26 = vsyncpa [#allocation3], 0
    %s27 = scalar_lea.sflag [#allocation3], 1
    %28 = vsyncpa %s27, 0
    %29 = vsyncpa [#allocation6], 0
    %30 = vsyncpa [#allocation9], 0
    %31 = vsyncpa [#allocation12], 0
    %32 = vsyncpa [#allocation15], 0
    %33 = vsyncpa [#allocation18], 0
    %34 = vsyncpa [#allocation21], 0
    %35 = vsyncpa [#allocation4], 0
    %s36 = scalar_lea.sflag [#allocation4], 1
    %37 = vsyncpa %s36, 0
    loop: start=0, step=1, limit=5
    $region2: #{tpu_custom_call.1} parent=1 // loop_pre_header
      _
    $region3: #{tpu_custom_call.1} parent=1 // loop_header
      %s39 = sphi 0, %s43
      %p40 = scmp.ge.s32.totalorder %s39, 5
      %s49 = sphi 0, %s51
      %s52 = sphi 0, %s49
      %s53 = sphi 0, %s52
      %s69 = sphi 0, %s53
      %s75 = sphi 0, %s77
      %s78 = sphi 0, %s75
      %s79 = sphi 0, %s78
      %s95 = sphi 0, %s79
      %s101 = sphi 0, %s103
      %s104 = sphi 0, %s101
      %s105 = sphi 0, %s104
      %s121 = sphi 0, %s105
      %s125 = sphi 0, %s125
      %s127 = sphi 0, %s125
      %s128 = sphi 0, %s127
      %s142 = sphi 0, %s128
      %s146 = sphi 0, %s146
      %s148 = sphi 0, %s146
      %s149 = sphi 0, %s148
      %s163 = sphi 0, %s149
      %s167 = sphi 0, %s167
      %s169 = sphi 0, %s167
      %s170 = sphi 0, %s169
      %s184 = sphi 0, %s170
      %s188 = sphi 0, %s188
      %s190 = sphi 0, %s188
      %s191 = sphi 0, %s190
      %s205 = sphi 0, %s191
      %s209 = sphi 0, %s209
      %s211 = sphi 0, %s209
      %s212 = sphi 0, %s211
      %s226 = sphi 0, %s212
      %s230 = sphi 0, %s230
      %s232 = sphi 0, %s230
      %s233 = sphi 0, %s232
      %s247 = sphi 0, %s233
      %s251 = sphi 0, %s251
      %s253 = sphi 0, %s251
      %s254 = sphi 0, %s253
      %s268 = sphi 0, %s254
      %s272 = sphi 0, %s272
      %s274 = sphi 0, %s272
      %s275 = sphi 0, %s274
      %s289 = sphi 0, %s275
      %s293 = sphi 0, %s293
      %s295 = sphi 0, %s293
      %s296 = sphi 0, %s295
      %s310 = sphi 0, %s296
      %s314 = sphi 0, %s314
      %s316 = sphi 0, %s314
      %s317 = sphi 0, %s316
      %s331 = sphi 0, %s317
      %s335 = sphi 0, %s335
      %s337 = sphi 0, %s335
      %s338 = sphi 0, %s337
      %s352 = sphi 0, %s338
      %s356 = sphi 0, %s356
      %s358 = sphi 0, %s356
      %s359 = sphi 0, %s358
      %s373 = sphi 0, %s359
      %s377 = sphi 0, %s377
      %s379 = sphi 0, %s377
      %s380 = sphi 0, %s379
      %s394 = sphi 0, %s380
      %s398 = sphi 0, %s398
      %s400 = sphi 0, %s398
      %s401 = sphi 0, %s400
      %s415 = sphi 0, %s401
      %s419 = sphi 0, %s419
      %s421 = sphi 0, %s419
      %s422 = sphi 0, %s421
      %s436 = sphi 0, %s422
      %s440 = sphi 0, %s440
      %s442 = sphi 0, %s440
      %s443 = sphi 0, %s442
      %s457 = sphi 0, %s443
      %s461 = sphi 0, %s461
      %s463 = sphi 0, %s461
      %s464 = sphi 0, %s463
      %s478 = sphi 0, %s464
      %s482 = sphi 0, %s482
      %s484 = sphi 0, %s482
      %s485 = sphi 0, %s484
      %s499 = sphi 0, %s485
      %s505 = sphi 0, %s507
      %s508 = sphi 0, %s505
      %s509 = sphi 0, %s508
      %s525 = sphi 0, %s509
    $region4: #{tpu_custom_call.1} parent=1 // loop_header_branch
      %42 = sbr.rel (%p40) target = $region8
    $region5: #{tpu_custom_call.1} parent=1 // loop_body
      %s44 = ssub.s32 %s39, 1
      %s45 = ssub.s32 %s39, 2
      %s46 = sadd.s32 %s39, 1
      %s47 = ssub.s32 %s39, %s46
      %p48 = scmp.eq.s32.totalorder %s47, 0
      %s50 = sadd.s32 %s49, 1
      %s51 = scalar_select %p48, %s49, %s50
      %p54 = pneg %p48
      %p55 = scmp.eq.s32.totalorder %s39, 2
      %p56 = por %p54, %p55
      %p57 = scmp.ne.s32.totalorder %s49, %s52
      %p58 = scmp.eq.s32.totalorder %s39, 0
      %p59 = por %p57, %p58
      %p60 = scmp.ne.s32.totalorder %s49, %s52
      %p61 = scmp.eq.s32.totalorder %s44, 2
      %p62 = por %p60, %p61
      %p63 = scmp.ne.s32.totalorder %s52, %s53
      %p64 = scmp.eq.s32.totalorder %s44, 0
      %p65 = por %p63, %p64
      %p66 = scmp.ne.s32.totalorder %s52, %s53
      %p67 = scmp.eq.s32.totalorder %s45, 2
      %p68 = por %p66, %p67
      %p70 = scmp.ne.s32.totalorder %s53, %s69
      %p71 = scmp.eq.s32.totalorder %s45, 0
      %p72 = por %p70, %p71
      %s73 = ssub.s32 %s39, %s46
      %p74 = scmp.eq.s32.totalorder %s73, 0
      %s76 = sadd.s32 %s75, 1
      %s77 = scalar_select %p74, %s75, %s76
      %p80 = pneg %p74
      %p81 = scmp.eq.s32.totalorder %s39, 2
      %p82 = por %p80, %p81
      %p83 = scmp.ne.s32.totalorder %s75, %s78
      %p84 = scmp.eq.s32.totalorder %s39, 0
      %p85 = por %p83, %p84
      %p86 = scmp.ne.s32.totalorder %s75, %s78
      %p87 = scmp.eq.s32.totalorder %s44, 2
      %p88 = por %p86, %p87
      %p89 = scmp.ne.s32.totalorder %s78, %s79
      %p90 = scmp.eq.s32.totalorder %s44, 0
      %p91 = por %p89, %p90
      %p92 = scmp.ne.s32.totalorder %s78, %s79
      %p93 = scmp.eq.s32.totalorder %s45, 2
      %p94 = por %p92, %p93
      %p96 = scmp.ne.s32.totalorder %s79, %s95
      %p97 = scmp.eq.s32.totalorder %s45, 0
      %p98 = por %p96, %p97
      %s99 = ssub.s32 %s39, %s46
      %p100 = scmp.eq.s32.totalorder %s99, 0
      %s102 = sadd.s32 %s101, 1
      %s103 = scalar_select %p100, %s101, %s102
      %p106 = pneg %p100
      %p107 = scmp.eq.s32.totalorder %s39, 2
      %p108 = por %p106, %p107
      %p109 = scmp.ne.s32.totalorder %s101, %s104
      %p110 = scmp.eq.s32.totalorder %s39, 0
      %p111 = por %p109, %p110
      %p112 = scmp.ne.s32.totalorder %s101, %s104
      %p113 = scmp.eq.s32.totalorder %s44, 2
      %p114 = por %p112, %p113
      %p115 = scmp.ne.s32.totalorder %s104, %s105
      %p116 = scmp.eq.s32.totalorder %s44, 0
      %p117 = por %p115, %p116
      %p118 = scmp.ne.s32.totalorder %s104, %s105
      %p119 = scmp.eq.s32.totalorder %s45, 2
      %p120 = por %p118, %p119
      %p122 = scmp.ne.s32.totalorder %s105, %s121
      %p123 = scmp.eq.s32.totalorder %s45, 0
      %p124 = por %p122, %p123
      %s126 = sadd.s32 %s125, 1
      %p129 = scmp.eq.s32.totalorder %s39, 2
      %p130 = scmp.ne.s32.totalorder %s125, %s127
      %p131 = scmp.eq.s32.totalorder %s39, 0
      %p132 = por %p130, %p131
      %p133 = scmp.ne.s32.totalorder %s125, %s127
      %p134 = scmp.eq.s32.totalorder %s44, 2
      %p135 = por %p133, %p134
      %p136 = scmp.ne.s32.totalorder %s127, %s128
      %p137 = scmp.eq.s32.totalorder %s44, 0
      %p138 = por %p136, %p137
      %p139 = scmp.ne.s32.totalorder %s127, %s128
      %p140 = scmp.eq.s32.totalorder %s45, 2
      %p141 = por %p139, %p140
      %p143 = scmp.ne.s32.totalorder %s128, %s142
      %p144 = scmp.eq.s32.totalorder %s45, 0
      %p145 = por %p143, %p144
      %s147 = sadd.s32 %s146, 1
      %p150 = scmp.eq.s32.totalorder %s39, 2
      %p151 = scmp.ne.s32.totalorder %s146, %s148
      %p152 = scmp.eq.s32.totalorder %s39, 0
      %p153 = por %p151, %p152
      %p154 = scmp.ne.s32.totalorder %s146, %s148
      %p155 = scmp.eq.s32.totalorder %s44, 2
      %p156 = por %p154, %p155
      %p157 = scmp.ne.s32.totalorder %s148, %s149
      %p158 = scmp.eq.s32.totalorder %s44, 0
      %p159 = por %p157, %p158
      %p160 = scmp.ne.s32.totalorder %s148, %s149
      %p161 = scmp.eq.s32.totalorder %s45, 2
      %p162 = por %p160, %p161
      %p164 = scmp.ne.s32.totalorder %s149, %s163
      %p165 = scmp.eq.s32.totalorder %s45, 0
      %p166 = por %p164, %p165
      %s168 = sadd.s32 %s167, 1
      %p171 = scmp.eq.s32.totalorder %s39, 2
      %p172 = scmp.ne.s32.totalorder %s167, %s169
      %p173 = scmp.eq.s32.totalorder %s39, 0
      %p174 = por %p172, %p173
      %p175 = scmp.ne.s32.totalorder %s167, %s169
      %p176 = scmp.eq.s32.totalorder %s44, 2
      %p177 = por %p175, %p176
      %p178 = scmp.ne.s32.totalorder %s169, %s170
      %p179 = scmp.eq.s32.totalorder %s44, 0
      %p180 = por %p178, %p179
      %p181 = scmp.ne.s32.totalorder %s169, %s170
      %p182 = scmp.eq.s32.totalorder %s45, 2
      %p183 = por %p181, %p182
      %p185 = scmp.ne.s32.totalorder %s170, %s184
      %p186 = scmp.eq.s32.totalorder %s45, 0
      %p187 = por %p185, %p186
      %s189 = sadd.s32 %s188, 1
      %p192 = scmp.eq.s32.totalorder %s39, 2
      %p193 = scmp.ne.s32.totalorder %s188, %s190
      %p194 = scmp.eq.s32.totalorder %s39, 0
      %p195 = por %p193, %p194
      %p196 = scmp.ne.s32.totalorder %s188, %s190
      %p197 = scmp.eq.s32.totalorder %s44, 2
      %p198 = por %p196, %p197
      %p199 = scmp.ne.s32.totalorder %s190, %s191
      %p200 = scmp.eq.s32.totalorder %s44, 0
      %p201 = por %p199, %p200
      %p202 = scmp.ne.s32.totalorder %s190, %s191
      %p203 = scmp.eq.s32.totalorder %s45, 2
      %p204 = por %p202, %p203
      %p206 = scmp.ne.s32.totalorder %s191, %s205
      %p207 = scmp.eq.s32.totalorder %s45, 0
      %p208 = por %p206, %p207
      %s210 = sadd.s32 %s209, 1
      %p213 = scmp.eq.s32.totalorder %s39, 2
      %p214 = scmp.ne.s32.totalorder %s209, %s211
      %p215 = scmp.eq.s32.totalorder %s39, 0
      %p216 = por %p214, %p215
      %p217 = scmp.ne.s32.totalorder %s209, %s211
      %p218 = scmp.eq.s32.totalorder %s44, 2
      %p219 = por %p217, %p218
      %p220 = scmp.ne.s32.totalorder %s211, %s212
      %p221 = scmp.eq.s32.totalorder %s44, 0
      %p222 = por %p220, %p221
      %p223 = scmp.ne.s32.totalorder %s211, %s212
      %p224 = scmp.eq.s32.totalorder %s45, 2
      %p225 = por %p223, %p224
      %p227 = scmp.ne.s32.totalorder %s212, %s226
      %p228 = scmp.eq.s32.totalorder %s45, 0
      %p229 = por %p227, %p228
      %s231 = sadd.s32 %s230, 1
      %p234 = scmp.eq.s32.totalorder %s39, 2
      %p235 = scmp.ne.s32.totalorder %s230, %s232
      %p236 = scmp.eq.s32.totalorder %s39, 0
      %p237 = por %p235, %p236
      %p238 = scmp.ne.s32.totalorder %s230, %s232
      %p239 = scmp.eq.s32.totalorder %s44, 2
      %p240 = por %p238, %p239
      %p241 = scmp.ne.s32.totalorder %s232, %s233
      %p242 = scmp.eq.s32.totalorder %s44, 0
      %p243 = por %p241, %p242
      %p244 = scmp.ne.s32.totalorder %s232, %s233
      %p245 = scmp.eq.s32.totalorder %s45, 2
      %p246 = por %p244, %p245
      %p248 = scmp.ne.s32.totalorder %s233, %s247
      %p249 = scmp.eq.s32.totalorder %s45, 0
      %p250 = por %p248, %p249
      %s252 = sadd.s32 %s251, 1
      %p255 = scmp.eq.s32.totalorder %s39, 2
      %p256 = scmp.ne.s32.totalorder %s251, %s253
      %p257 = scmp.eq.s32.totalorder %s39, 0
      %p258 = por %p256, %p257
      %p259 = scmp.ne.s32.totalorder %s251, %s253
      %p260 = scmp.eq.s32.totalorder %s44, 2
      %p261 = por %p259, %p260
      %p262 = scmp.ne.s32.totalorder %s253, %s254
      %p263 = scmp.eq.s32.totalorder %s44, 0
      %p264 = por %p262, %p263
      %p265 = scmp.ne.s32.totalorder %s253, %s254
      %p266 = scmp.eq.s32.totalorder %s45, 2
      %p267 = por %p265, %p266
      %p269 = scmp.ne.s32.totalorder %s254, %s268
      %p270 = scmp.eq.s32.totalorder %s45, 0
      %p271 = por %p269, %p270
      %s273 = sadd.s32 %s272, 1
      %p276 = scmp.eq.s32.totalorder %s39, 2
      %p277 = scmp.ne.s32.totalorder %s272, %s274
      %p278 = scmp.eq.s32.totalorder %s39, 0
      %p279 = por %p277, %p278
      %p280 = scmp.ne.s32.totalorder %s272, %s274
      %p281 = scmp.eq.s32.totalorder %s44, 2
      %p282 = por %p280, %p281
      %p283 = scmp.ne.s32.totalorder %s274, %s275
      %p284 = scmp.eq.s32.totalorder %s44, 0
      %p285 = por %p283, %p284
      %p286 = scmp.ne.s32.totalorder %s274, %s275
      %p287 = scmp.eq.s32.totalorder %s45, 2
      %p288 = por %p286, %p287
      %p290 = scmp.ne.s32.totalorder %s275, %s289
      %p291 = scmp.eq.s32.totalorder %s45, 0
      %p292 = por %p290, %p291
      %s294 = sadd.s32 %s293, 1
      %p297 = scmp.eq.s32.totalorder %s39, 2
      %p298 = scmp.ne.s32.totalorder %s293, %s295
      %p299 = scmp.eq.s32.totalorder %s39, 0
      %p300 = por %p298, %p299
      %p301 = scmp.ne.s32.totalorder %s293, %s295
      %p302 = scmp.eq.s32.totalorder %s44, 2
      %p303 = por %p301, %p302
      %p304 = scmp.ne.s32.totalorder %s295, %s296
      %p305 = scmp.eq.s32.totalorder %s44, 0
      %p306 = por %p304, %p305
      %p307 = scmp.ne.s32.totalorder %s295, %s296
      %p308 = scmp.eq.s32.totalorder %s45, 2
      %p309 = por %p307, %p308
      %p311 = scmp.ne.s32.totalorder %s296, %s310
      %p312 = scmp.eq.s32.totalorder %s45, 0
      %p313 = por %p311, %p312
      %s315 = sadd.s32 %s314, 1
      %p318 = scmp.eq.s32.totalorder %s39, 2
      %p319 = scmp.ne.s32.totalorder %s314, %s316
      %p320 = scmp.eq.s32.totalorder %s39, 0
      %p321 = por %p319, %p320
      %p322 = scmp.ne.s32.totalorder %s314, %s316
      %p323 = scmp.eq.s32.totalorder %s44, 2
      %p324 = por %p322, %p323
      %p325 = scmp.ne.s32.totalorder %s316, %s317
      %p326 = scmp.eq.s32.totalorder %s44, 0
      %p327 = por %p325, %p326
      %p328 = scmp.ne.s32.totalorder %s316, %s317
      %p329 = scmp.eq.s32.totalorder %s45, 2
      %p330 = por %p328, %p329
      %p332 = scmp.ne.s32.totalorder %s317, %s331
      %p333 = scmp.eq.s32.totalorder %s45, 0
      %p334 = por %p332, %p333
      %s336 = sadd.s32 %s335, 1
      %p339 = scmp.eq.s32.totalorder %s39, 2
      %p340 = scmp.ne.s32.totalorder %s335, %s337
      %p341 = scmp.eq.s32.totalorder %s39, 0
      %p342 = por %p340, %p341
      %p343 = scmp.ne.s32.totalorder %s335, %s337
      %p344 = scmp.eq.s32.totalorder %s44, 2
      %p345 = por %p343, %p344
      %p346 = scmp.ne.s32.totalorder %s337, %s338
      %p347 = scmp.eq.s32.totalorder %s44, 0
      %p348 = por %p346, %p347
      %p349 = scmp.ne.s32.totalorder %s337, %s338
      %p350 = scmp.eq.s32.totalorder %s45, 2
      %p351 = por %p349, %p350
      %p353 = scmp.ne.s32.totalorder %s338, %s352
      %p354 = scmp.eq.s32.totalorder %s45, 0
      %p355 = por %p353, %p354
      %s357 = sadd.s32 %s356, 1
      %p360 = scmp.eq.s32.totalorder %s39, 2
      %p361 = scmp.ne.s32.totalorder %s356, %s358
      %p362 = scmp.eq.s32.totalorder %s39, 0
      %p363 = por %p361, %p362
      %p364 = scmp.ne.s32.totalorder %s356, %s358
      %p365 = scmp.eq.s32.totalorder %s44, 2
      %p366 = por %p364, %p365
      %p367 = scmp.ne.s32.totalorder %s358, %s359
      %p368 = scmp.eq.s32.totalorder %s44, 0
      %p369 = por %p367, %p368
      %p370 = scmp.ne.s32.totalorder %s358, %s359
      %p371 = scmp.eq.s32.totalorder %s45, 2
      %p372 = por %p370, %p371
      %p374 = scmp.ne.s32.totalorder %s359, %s373
      %p375 = scmp.eq.s32.totalorder %s45, 0
      %p376 = por %p374, %p375
      %s378 = sadd.s32 %s377, 1
      %p381 = scmp.eq.s32.totalorder %s39, 2
      %p382 = scmp.ne.s32.totalorder %s377, %s379
      %p383 = scmp.eq.s32.totalorder %s39, 0
      %p384 = por %p382, %p383
      %p385 = scmp.ne.s32.totalorder %s377, %s379
      %p386 = scmp.eq.s32.totalorder %s44, 2
      %p387 = por %p385, %p386
      %p388 = scmp.ne.s32.totalorder %s379, %s380
      %p389 = scmp.eq.s32.totalorder %s44, 0
      %p390 = por %p388, %p389
      %p391 = scmp.ne.s32.totalorder %s379, %s380
      %p392 = scmp.eq.s32.totalorder %s45, 2
      %p393 = por %p391, %p392
      %p395 = scmp.ne.s32.totalorder %s380, %s394
      %p396 = scmp.eq.s32.totalorder %s45, 0
      %p397 = por %p395, %p396
      %s399 = sadd.s32 %s398, 1
      %p402 = scmp.eq.s32.totalorder %s39, 2
      %p403 = scmp.ne.s32.totalorder %s398, %s400
      %p404 = scmp.eq.s32.totalorder %s39, 0
      %p405 = por %p403, %p404
      %p406 = scmp.ne.s32.totalorder %s398, %s400
      %p407 = scmp.eq.s32.totalorder %s44, 2
      %p408 = por %p406, %p407
      %p409 = scmp.ne.s32.totalorder %s400, %s401
      %p410 = scmp.eq.s32.totalorder %s44, 0
      %p411 = por %p409, %p410
      %p412 = scmp.ne.s32.totalorder %s400, %s401
      %p413 = scmp.eq.s32.totalorder %s45, 2
      %p414 = por %p412, %p413
      %p416 = scmp.ne.s32.totalorder %s401, %s415
      %p417 = scmp.eq.s32.totalorder %s45, 0
      %p418 = por %p416, %p417
      %s420 = sadd.s32 %s419, 1
      %p423 = scmp.eq.s32.totalorder %s39, 2
      %p424 = scmp.ne.s32.totalorder %s419, %s421
      %p425 = scmp.eq.s32.totalorder %s39, 0
      %p426 = por %p424, %p425
      %p427 = scmp.ne.s32.totalorder %s419, %s421
      %p428 = scmp.eq.s32.totalorder %s44, 2
      %p429 = por %p427, %p428
      %p430 = scmp.ne.s32.totalorder %s421, %s422
      %p431 = scmp.eq.s32.totalorder %s44, 0
      %p432 = por %p430, %p431
      %p433 = scmp.ne.s32.totalorder %s421, %s422
      %p434 = scmp.eq.s32.totalorder %s45, 2
      %p435 = por %p433, %p434
      %p437 = scmp.ne.s32.totalorder %s422, %s436
      %p438 = scmp.eq.s32.totalorder %s45, 0
      %p439 = por %p437, %p438
      %s441 = sadd.s32 %s440, 1
      %p444 = scmp.eq.s32.totalorder %s39, 2
      %p445 = scmp.ne.s32.totalorder %s440, %s442
      %p446 = scmp.eq.s32.totalorder %s39, 0
      %p447 = por %p445, %p446
      %p448 = scmp.ne.s32.totalorder %s440, %s442
      %p449 = scmp.eq.s32.totalorder %s44, 2
      %p450 = por %p448, %p449
      %p451 = scmp.ne.s32.totalorder %s442, %s443
      %p452 = scmp.eq.s32.totalorder %s44, 0
      %p453 = por %p451, %p452
      %p454 = scmp.ne.s32.totalorder %s442, %s443
      %p455 = scmp.eq.s32.totalorder %s45, 2
      %p456 = por %p454, %p455
      %p458 = scmp.ne.s32.totalorder %s443, %s457
      %p459 = scmp.eq.s32.totalorder %s45, 0
      %p460 = por %p458, %p459
      %s462 = sadd.s32 %s461, 1
      %p465 = scmp.eq.s32.totalorder %s39, 2
      %p466 = scmp.ne.s32.totalorder %s461, %s463
      %p467 = scmp.eq.s32.totalorder %s39, 0
      %p468 = por %p466, %p467
      %p469 = scmp.ne.s32.totalorder %s461, %s463
      %p470 = scmp.eq.s32.totalorder %s44, 2
      %p471 = por %p469, %p470
      %p472 = scmp.ne.s32.totalorder %s463, %s464
      %p473 = scmp.eq.s32.totalorder %s44, 0
      %p474 = por %p472, %p473
      %p475 = scmp.ne.s32.totalorder %s463, %s464
      %p476 = scmp.eq.s32.totalorder %s45, 2
      %p477 = por %p475, %p476
      %p479 = scmp.ne.s32.totalorder %s464, %s478
      %p480 = scmp.eq.s32.totalorder %s45, 0
      %p481 = por %p479, %p480
      %s483 = sadd.s32 %s482, 1
      %p486 = scmp.eq.s32.totalorder %s39, 2
      %p487 = scmp.ne.s32.totalorder %s482, %s484
      %p488 = scmp.eq.s32.totalorder %s39, 0
      %p489 = por %p487, %p488
      %p490 = scmp.ne.s32.totalorder %s482, %s484
      %p491 = scmp.eq.s32.totalorder %s44, 2
      %p492 = por %p490, %p491
      %p493 = scmp.ne.s32.totalorder %s484, %s485
      %p494 = scmp.eq.s32.totalorder %s44, 0
      %p495 = por %p493, %p494
      %p496 = scmp.ne.s32.totalorder %s484, %s485
      %p497 = scmp.eq.s32.totalorder %s45, 2
      %p498 = por %p496, %p497
      %p500 = scmp.ne.s32.totalorder %s485, %s499
      %p501 = scmp.eq.s32.totalorder %s45, 0
      %p502 = por %p500, %p501
      %s503 = ssub.s32 %s39, %s46
      %p504 = scmp.eq.s32.totalorder %s503, 0
      %s506 = sadd.s32 %s505, 1
      %s507 = scalar_select %p504, %s505, %s506
      %p510 = pneg %p504
      %p511 = scmp.eq.s32.totalorder %s39, 2
      %p512 = por %p510, %p511
      %p513 = scmp.ne.s32.totalorder %s505, %s508
      %p514 = scmp.eq.s32.totalorder %s39, 0
      %p515 = por %p513, %p514
      %p516 = scmp.ne.s32.totalorder %s505, %s508
      %p517 = scmp.eq.s32.totalorder %s44, 2
      %p518 = por %p516, %p517
      %p519 = scmp.ne.s32.totalorder %s508, %s509
      %p520 = scmp.eq.s32.totalorder %s44, 0
      %p521 = por %p519, %p520
      %p522 = scmp.ne.s32.totalorder %s508, %s509
      %p523 = scmp.eq.s32.totalorder %s45, 2
      %p524 = por %p522, %p523
      %p526 = scmp.ne.s32.totalorder %s509, %s525
      %p527 = scmp.eq.s32.totalorder %s45, 0
      %p528 = por %p526, %p527
      %p529 = scmp.le.s32.totalorder 1, %s39
      %p530 = scmp.lt.s32.totalorder %s39, 4
      %p531 = pnand %p529, %p530
      %p532 = pneg %p531
      // Predicated region
      $region9: #{tpu_custom_call.1} parent=5 // pred_check
        _
      $region10: #{tpu_custom_call.1} parent=5 // pred_check_branch
        %534 = sbr.rel (%p531) target = $region12
      $region11: #{tpu_custom_call.1} parent=5 // pred_region
        %s535 = ssub.s32 %s39, 1
        // Predicated region
        $region13: #{tpu_custom_call.1} parent=11 // pred_check
          %p536 = pneg %p138
        $region14: #{tpu_custom_call.1} parent=11 // pred_check_branch
          %538 = sbr.rel (%p536) target = $region16
        $region15: #{tpu_custom_call.1} parent=11 // pred_region
          %s540 = ssub.s32 256, 256
          %541 = vsyncadd [#allocation6], %s540
          %s542 = sshll.u32 [#allocation5], 4
          %s543 = int_to_ptr.vmem [resolvable:$true] %s542
          %548 = dma.hbm_to_vmem [thread:$0]  %s3, 256, %s543, [#allocation6], 128, 128, 8
        $region16: #{tpu_custom_call.1} parent=11 // pred_fallthru
          _
        // Predicated region
        $region17: #{tpu_custom_call.1} parent=11 // pred_check
          %p549 = pneg %p159
        $region18: #{tpu_custom_call.1} parent=11 // pred_check_branch
          %551 = sbr.rel (%p549) target = $region20
        $region19: #{tpu_custom_call.1} parent=11 // pred_region
          %s553 = ssub.s32 4096, 4096
          %554 = vsyncadd [#allocation6], %s553
          %s555 = sshll.u32 [#allocation7], 4
          %s556 = int_to_ptr.vmem [resolvable:$true] %s555
          %561 = dma.hbm_to_vmem [thread:$0]  %s4, 4096, %s556, [#allocation6], 128, 128, 8
        $region20: #{tpu_custom_call.1} parent=11 // pred_fallthru
          _
        // Predicated region
        $region21: #{tpu_custom_call.1} parent=11 // pred_check
          %p562 = pneg %p180
        $region22: #{tpu_custom_call.1} parent=11 // pred_check_branch
          %564 = sbr.rel (%p562) target = $region24
        $region23: #{tpu_custom_call.1} parent=11 // pred_region
          _
        $region24: #{tpu_custom_call.1} parent=11 // pred_fallthru
          _
        // Predicated region
        $region25: #{tpu_custom_call.1} parent=11 // pred_check
          %p565 = pneg %p201
        $region26: #{tpu_custom_call.1} parent=11 // pred_check_branch
          %567 = sbr.rel (%p565) target = $region28
        $region27: #{tpu_custom_call.1} parent=11 // pred_region
          _
        $region28: #{tpu_custom_call.1} parent=11 // pred_fallthru
          _
        // Predicated region
        $region29: #{tpu_custom_call.1} parent=11 // pred_check
          %p568 = pneg %p222
        $region30: #{tpu_custom_call.1} parent=11 // pred_check_branch
          %570 = sbr.rel (%p568) target = $region32
        $region31: #{tpu_custom_call.1} parent=11 // pred_region
          %s572 = ssub.s32 32, 32
          %573 = vsyncadd [#allocation9], %s572
          %s575 = sshll.u32 [#allocation8], 4
          %s576 = int_to_ptr.vmem [resolvable:$true] %s575
          %578 = dma.hbm_to_vmem [thread:$0]  %s7, 32, %s576, [#allocation9]
        $region32: #{tpu_custom_call.1} parent=11 // pred_fallthru
          _
        // Predicated region
        $region33: #{tpu_custom_call.1} parent=11 // pred_check
          %p579 = pneg %p243
        $region34: #{tpu_custom_call.1} parent=11 // pred_check_branch
          %581 = sbr.rel (%p579) target = $region36
        $region35: #{tpu_custom_call.1} parent=11 // pred_region
          %s583 = ssub.s32 768, 768
          %584 = vsyncadd [#allocation9], %s583
          %s585 = sshll.u32 [#allocation10], 4
          %s586 = int_to_ptr.vmem [resolvable:$true] %s585
          %591 = dma.hbm_to_vmem [thread:$0]  %s8, 768, %s586, [#allocation9], 256, 256, 16
        $region36: #{tpu_custom_call.1} parent=11 // pred_fallthru
          _
        // Predicated region
        $region37: #{tpu_custom_call.1} parent=11 // pred_check
          %p592 = pneg %p264
        $region38: #{tpu_custom_call.1} parent=11 // pred_check_branch
          %594 = sbr.rel (%p592) target = $region40
        $region39: #{tpu_custom_call.1} parent=11 // pred_region
          %s596 = ssub.s32 4096, 4096
          %597 = vsyncadd [#allocation12], %s596
          %s598 = sshll.u32 [#allocation11], 4
          %s599 = int_to_ptr.vmem [resolvable:$true] %s598
          %604 = dma.hbm_to_vmem [thread:$0]  %s9, 4096, %s599, [#allocation12], 128, 128, 8
        $region40: #{tpu_custom_call.1} parent=11 // pred_fallthru
          _
        // Predicated region
        $region41: #{tpu_custom_call.1} parent=11 // pred_check
          %p605 = pneg %p285
        $region42: #{tpu_custom_call.1} parent=11 // pred_check_branch
          %607 = sbr.rel (%p605) target = $region44
        $region43: #{tpu_custom_call.1} parent=11 // pred_region
          %s609 = ssub.s32 32, 32
          %610 = vsyncadd [#allocation12], %s609
          %s612 = sshll.u32 [#allocation13], 4
          %s613 = int_to_ptr.vmem [resolvable:$true] %s612
          %615 = dma.hbm_to_vmem [thread:$0]  %s10, 32, %s613, [#allocation12]
        $region44: #{tpu_custom_call.1} parent=11 // pred_fallthru
          _
        // Predicated region
        $region45: #{tpu_custom_call.1} parent=11 // pred_check
          %p616 = pneg %p306
        $region46: #{tpu_custom_call.1} parent=11 // pred_check_branch
          %618 = sbr.rel (%p616) target = $region48
        $region47: #{tpu_custom_call.1} parent=11 // pred_region
          %s620 = ssub.s32 32, 32
          %621 = vsyncadd [#allocation15], %s620
          %s623 = sshll.u32 [#allocation14], 4
          %s624 = int_to_ptr.vmem [resolvable:$true] %s623
          %626 = dma.hbm_to_vmem [thread:$0]  %s11, 32, %s624, [#allocation15]
        $region48: #{tpu_custom_call.1} parent=11 // pred_fallthru
          _
        // Predicated region
        $region49: #{tpu_custom_call.1} parent=11 // pred_check
          %p627 = pneg %p327
        $region50: #{tpu_custom_call.1} parent=11 // pred_check_branch
          %629 = sbr.rel (%p627) target = $region52
        $region51: #{tpu_custom_call.1} parent=11 // pred_region
          %s631 = ssub.s32 32, 32
          %632 = vsyncadd [#allocation15], %s631
          %s634 = sshll.u32 [#allocation16], 4
          %s635 = int_to_ptr.vmem [resolvable:$true] %s634
          %637 = dma.hbm_to_vmem [thread:$0]  %s12, 32, %s635, [#allocation15]
        $region52: #{tpu_custom_call.1} parent=11 // pred_fallthru
          _
        // Predicated region
        $region53: #{tpu_custom_call.1} parent=11 // pred_check
          %p638 = pneg %p348
        $region54: #{tpu_custom_call.1} parent=11 // pred_check_branch
          %640 = sbr.rel (%p638) target = $region56
        $region55: #{tpu_custom_call.1} parent=11 // pred_region
          %s642 = ssub.s32 768, 768
          %643 = vsyncadd [#allocation18], %s642
          %s644 = sshll.u32 [#allocation17], 4
          %s645 = int_to_ptr.vmem [resolvable:$true] %s644
          %650 = dma.hbm_to_vmem [thread:$0]  %s13, 768, %s645, [#allocation18], 256, 256, 16
        $region56: #{tpu_custom_call.1} parent=11 // pred_fallthru
          _
        // Predicated region
        $region57: #{tpu_custom_call.1} parent=11 // pred_check
          %p651 = pneg %p369
        $region58: #{tpu_custom_call.1} parent=11 // pred_check_branch
          %653 = sbr.rel (%p651) target = $region60
        $region59: #{tpu_custom_call.1} parent=11 // pred_region
          _
        $region60: #{tpu_custom_call.1} parent=11 // pred_fallthru
          _
        // Predicated region
        $region61: #{tpu_custom_call.1} parent=11 // pred_check
          %p654 = pneg %p390
        $region62: #{tpu_custom_call.1} parent=11 // pred_check_branch
          %656 = sbr.rel (%p654) target = $region64
        $region63: #{tpu_custom_call.1} parent=11 // pred_region
          _
        $region64: #{tpu_custom_call.1} parent=11 // pred_fallthru
          _
        // Predicated region
        $region65: #{tpu_custom_call.1} parent=11 // pred_check
          %p657 = pneg %p411
        $region66: #{tpu_custom_call.1} parent=11 // pred_check_branch
          %659 = sbr.rel (%p657) target = $region68
        $region67: #{tpu_custom_call.1} parent=11 // pred_region
          _
        $region68: #{tpu_custom_call.1} parent=11 // pred_fallthru
          _
        // Predicated region
        $region69: #{tpu_custom_call.1} parent=11 // pred_check
          %p660 = pneg %p432
        $region70: #{tpu_custom_call.1} parent=11 // pred_check_branch
          %662 = sbr.rel (%p660) target = $region72
        $region71: #{tpu_custom_call.1} parent=11 // pred_region
          _
        $region72: #{tpu_custom_call.1} parent=11 // pred_fallthru
          _
        // Predicated region
        $region73: #{tpu_custom_call.1} parent=11 // pred_check
          %p663 = pneg %p453
        $region74: #{tpu_custom_call.1} parent=11 // pred_check_branch
          %665 = sbr.rel (%p663) target = $region76
        $region75: #{tpu_custom_call.1} parent=11 // pred_region
          %s667 = ssub.s32 768, 768
          %668 = vsyncadd [#allocation18], %s667
          %s669 = sshll.u32 [#allocation19], 4
          %s670 = int_to_ptr.vmem [resolvable:$true] %s669
          %675 = dma.hbm_to_vmem [thread:$0]  %s18, 768, %s670, [#allocation18], 256, 256, 16
        $region76: #{tpu_custom_call.1} parent=11 // pred_fallthru
          _
        // Predicated region
        $region77: #{tpu_custom_call.1} parent=11 // pred_check
          %p676 = pneg %p474
        $region78: #{tpu_custom_call.1} parent=11 // pred_check_branch
          %678 = sbr.rel (%p676) target = $region80
        $region79: #{tpu_custom_call.1} parent=11 // pred_region
          %s680 = ssub.s32 2048, 2048
          %681 = vsyncadd [#allocation21], %s680
          %s682 = sshll.u32 [#allocation20], 4
          %s683 = int_to_ptr.vmem [resolvable:$true] %s682
          %688 = dma.hbm_to_vmem [thread:$0]  %s19, 2048, %s683, [#allocation21], 64, 64, 4
        $region80: #{tpu_custom_call.1} parent=11 // pred_fallthru
          _
        // Predicated region
        $region81: #{tpu_custom_call.1} parent=11 // pred_check
          %p689 = pneg %p495
        $region82: #{tpu_custom_call.1} parent=11 // pred_check_branch
          %691 = sbr.rel (%p689) target = $region84
        $region83: #{tpu_custom_call.1} parent=11 // pred_region
          _
        $region84: #{tpu_custom_call.1} parent=11 // pred_fallthru
          _
      $region12: #{tpu_custom_call.1} parent=5 // pred_fallthru
        _
      %p692 = scmp.lt.s32.totalorder %s39, 3
      // Predicated region
      $region85: #{tpu_custom_call.1} parent=5 // pred_check
        %p693 = pneg %p692
      $region86: #{tpu_custom_call.1} parent=5 // pred_check_branch
        %695 = sbr.rel (%p693) target = $region88
      $region87: #{tpu_custom_call.1} parent=5 // pred_region
        // Predicated region
        $region89: #{tpu_custom_call.1} parent=87 // pred_check
          %p696 = pneg %p59
        $region90: #{tpu_custom_call.1} parent=87 // pred_check_branch
          %698 = sbr.rel (%p696) target = $region92
        $region91: #{tpu_custom_call.1} parent=87 // pred_region
          %s699 = smul.u32 4, %s39
          %p700 = scmp.lt.s32.totalorder %s699, 11
          %s701 = scalar_select %p700, %s699, 11
          %s702 = smul.addr %s701, 8
          %s703 = scalar_lea.vmem %s0, %s702
          %s704 = smul.u32 4, %s39
        $region92: #{tpu_custom_call.1} parent=87 // pred_fallthru
          _
        // Predicated region
        $region93: #{tpu_custom_call.1} parent=87 // pred_check
          %p705 = pneg %p85
        $region94: #{tpu_custom_call.1} parent=87 // pred_check_branch
          %707 = sbr.rel (%p705) target = $region96
        $region95: #{tpu_custom_call.1} parent=87 // pred_region
          %s708 = smul.u32 4, %s39
          %p709 = scmp.lt.s32.totalorder %s708, 11
          %s710 = scalar_select %p709, %s708, 11
          %s711 = smul.addr %s710, 8
          %s712 = scalar_lea.vmem %s1, %s711
          %s713 = smul.u32 4, %s39
        $region96: #{tpu_custom_call.1} parent=87 // pred_fallthru
          _
        // Predicated region
        $region97: #{tpu_custom_call.1} parent=87 // pred_check
          %p714 = pneg %p111
        $region98: #{tpu_custom_call.1} parent=87 // pred_check_branch
          %716 = sbr.rel (%p714) target = $region100
        $region99: #{tpu_custom_call.1} parent=87 // pred_region
          %s717 = sand.u32 %s101, 1
          %s718 = scalar_lea.sflag [#allocation3], %s717
          %s719 = sand.u32 %s101, 1
          %s720 = smul.addr %s719, 64
          %s721 = scalar_lea.vmem [#allocation2], %s720
          %s722 = smul.u32 4, %s39
          %s724 = ssub.s32 1024, 1024
          %725 = vsyncadd %s718, %s724
          %s726 = smul.addr %s722, 2
          %s727 = smul.addr %s726, 128
          %s728 = scalar_lea.hbm %s2, %s727
          %s729 = sshll.u32 %s721, 4
          %s730 = int_to_ptr.vmem [resolvable:$true] %s729
          %735 = dma.hbm_to_vmem [thread:$0]  %s728, 1024, %s730, %s718, 256, 256, 16
        $region100: #{tpu_custom_call.1} parent=87 // pred_fallthru
          _
      $region88: #{tpu_custom_call.1} parent=5 // pred_fallthru
        _
      %p736 = scmp.le.s32.totalorder 1, %s39
      %p737 = scmp.lt.s32.totalorder %s39, 4
      %p738 = pnand %p736, %p737
      %p739 = pneg %p738
      // Predicated region
      $region101: #{tpu_custom_call.1} parent=5 // pred_check
        _
      $region102: #{tpu_custom_call.1} parent=5 // pred_check_branch
        %741 = sbr.rel (%p738) target = $region104
      $region103: #{tpu_custom_call.1} parent=5 // pred_region
        %s742 = ssub.s32 %s39, 1
        %s743 = sand.u32 %s104, 1
        %s744 = scalar_lea.sflag [#allocation3], %s743
        %s745 = sand.u32 %s104, 1
        %s746 = smul.addr %s745, 64
        %s747 = scalar_lea.vmem [#allocation2], %s746
        // Predicated region
        $region105: #{tpu_custom_call.1} parent=103 // pred_check
          %p748 = pneg %p117
        $region106: #{tpu_custom_call.1} parent=103 // pred_check_branch
          %750 = sbr.rel (%p748) target = $region108
        $region107: #{tpu_custom_call.1} parent=103 // pred_region
          %751 = dma.done %s744, 1024
        $region108: #{tpu_custom_call.1} parent=103 // pred_fallthru
          _
        // Predicated region
        $region109: #{tpu_custom_call.1} parent=103 // pred_check
          %p752 = pneg %p138
        $region110: #{tpu_custom_call.1} parent=103 // pred_check_branch
          %754 = sbr.rel (%p752) target = $region112
        $region111: #{tpu_custom_call.1} parent=103 // pred_region
          %755 = dma.done [#allocation6], 256
        $region112: #{tpu_custom_call.1} parent=103 // pred_fallthru
          _
        // Predicated region
        $region113: #{tpu_custom_call.1} parent=103 // pred_check
          %p756 = pneg %p159
        $region114: #{tpu_custom_call.1} parent=103 // pred_check_branch
          %758 = sbr.rel (%p756) target = $region116
        $region115: #{tpu_custom_call.1} parent=103 // pred_region
          %759 = dma.done [#allocation6], 4096
        $region116: #{tpu_custom_call.1} parent=103 // pred_fallthru
          _
        // Predicated region
        $region117: #{tpu_custom_call.1} parent=103 // pred_check
          %p760 = pneg %p222
        $region118: #{tpu_custom_call.1} parent=103 // pred_check_branch
          %762 = sbr.rel (%p760) target = $region120
        $region119: #{tpu_custom_call.1} parent=103 // pred_region
          %763 = dma.done [#allocation9], 32
        $region120: #{tpu_custom_call.1} parent=103 // pred_fallthru
          _
        // Predicated region
        $region121: #{tpu_custom_call.1} parent=103 // pred_check
          %p764 = pneg %p243
        $region122: #{tpu_custom_call.1} parent=103 // pred_check_branch
          %766 = sbr.rel (%p764) target = $region124
        $region123: #{tpu_custom_call.1} parent=103 // pred_region
          %767 = dma.done [#allocation9], 768
        $region124: #{tpu_custom_call.1} parent=103 // pred_fallthru
          _
        // Predicated region
        $region125: #{tpu_custom_call.1} parent=103 // pred_check
          %p768 = pneg %p264
        $region126: #{tpu_custom_call.1} parent=103 // pred_check_branch
          %770 = sbr.rel (%p768) target = $region128
        $region127: #{tpu_custom_call.1} parent=103 // pred_region
          %771 = dma.done [#allocation12], 4096
        $region128: #{tpu_custom_call.1} parent=103 // pred_fallthru
          _
        // Predicated region
        $region129: #{tpu_custom_call.1} parent=103 // pred_check
          %p772 = pneg %p285
        $region130: #{tpu_custom_call.1} parent=103 // pred_check_branch
          %774 = sbr.rel (%p772) target = $region132
        $region131: #{tpu_custom_call.1} parent=103 // pred_region
          %775 = dma.done [#allocation12], 32
        $region132: #{tpu_custom_call.1} parent=103 // pred_fallthru
          _
        // Predicated region
        $region133: #{tpu_custom_call.1} parent=103 // pred_check
          %p776 = pneg %p306
        $region134: #{tpu_custom_call.1} parent=103 // pred_check_branch
          %778 = sbr.rel (%p776) target = $region136
        $region135: #{tpu_custom_call.1} parent=103 // pred_region
          %779 = dma.done [#allocation15], 32
        $region136: #{tpu_custom_call.1} parent=103 // pred_fallthru
          _
        // Predicated region
        $region137: #{tpu_custom_call.1} parent=103 // pred_check
          %p780 = pneg %p327
        $region138: #{tpu_custom_call.1} parent=103 // pred_check_branch
          %782 = sbr.rel (%p780) target = $region140
        $region139: #{tpu_custom_call.1} parent=103 // pred_region
          %783 = dma.done [#allocation15], 32
        $region140: #{tpu_custom_call.1} parent=103 // pred_fallthru
          _
        // Predicated region
        $region141: #{tpu_custom_call.1} parent=103 // pred_check
          %p784 = pneg %p348
        $region142: #{tpu_custom_call.1} parent=103 // pred_check_branch
          %786 = sbr.rel (%p784) target = $region144
        $region143: #{tpu_custom_call.1} parent=103 // pred_region
          %787 = dma.done [#allocation18], 768
        $region144: #{tpu_custom_call.1} parent=103 // pred_fallthru
          _
        // Predicated region
        $region145: #{tpu_custom_call.1} parent=103 // pred_check
          %p788 = pneg %p453
        $region146: #{tpu_custom_call.1} parent=103 // pred_check_branch
          %790 = sbr.rel (%p788) target = $region148
        $region147: #{tpu_custom_call.1} parent=103 // pred_region
          %791 = dma.done [#allocation18], 768
        $region148: #{tpu_custom_call.1} parent=103 // pred_fallthru
          _
        // Predicated region
        $region149: #{tpu_custom_call.1} parent=103 // pred_check
          %p792 = pneg %p474
        $region150: #{tpu_custom_call.1} parent=103 // pred_check_branch
          %794 = sbr.rel (%p792) target = $region152
        $region151: #{tpu_custom_call.1} parent=103 // pred_region
          %795 = dma.done [#allocation21], 2048
        $region152: #{tpu_custom_call.1} parent=103 // pred_fallthru
          _
        %s796 = smul.u32 4, %s44
        %p797 = scmp.lt.s32.totalorder %s796, 11
        %s798 = scalar_select %p797, %s796, 11
        %s799 = smul.addr %s798, 8
        %s800 = scalar_lea.vmem %s0, %s799
        %p801 = pneg %p65
        %p802 = pneg %p62
        %s803 = smul.u32 4, %s44
        %p804 = scmp.lt.s32.totalorder %s803, 11
        %s805 = scalar_select %p804, %s803, 11
        %s806 = smul.addr %s805, 8
        %s807 = scalar_lea.vmem %s1, %s806
        %p808 = pneg %p91
        %p809 = pneg %p88
        %s810 = sand.u32 %s104, 1
        %s811 = scalar_lea.sflag [#allocation3], %s810
        %s812 = sand.u32 %s104, 1
        %s813 = smul.addr %s812, 64
        %s814 = scalar_lea.vmem [#allocation2], %s813
        %p815 = pneg %p117
        %p816 = pneg %p114
        %p817 = pneg %p138
        %p818 = pneg %p135
        %p819 = pneg %p159
        %p820 = pneg %p156
        %p821 = pneg %p180
        %p822 = pneg %p177
        %p823 = pneg %p201
        %p824 = pneg %p198
        %p825 = pneg %p222
        %p826 = pneg %p219
        %p827 = pneg %p243
        %p828 = pneg %p240
        %p829 = pneg %p264
        %p830 = pneg %p261
        %p831 = pneg %p285
        %p832 = pneg %p282
        %p833 = pneg %p306
        %p834 = pneg %p303
        %p835 = pneg %p327
        %p836 = pneg %p324
        %p837 = pneg %p348
        %p838 = pneg %p345
        %p839 = pneg %p369
        %p840 = pneg %p366
        %p841 = pneg %p390
        %p842 = pneg %p387
        %p843 = pneg %p411
        %p844 = pneg %p408
        %p845 = pneg %p432
        %p846 = pneg %p429
        %p847 = pneg %p453
        %p848 = pneg %p450
        %p849 = pneg %p474
        %p850 = pneg %p471
        %p851 = pneg %p495
        %p852 = pneg %p492
        %p853 = pneg %p521
        %p854 = pneg %p518
        %s855 = sand.u32 %s508, 1
        %s856 = scalar_lea.sflag [#allocation4], %s855
        %s857 = sand.u32 %s508, 1
        %s858 = smul.addr %s857, 32
        %s859 = scalar_lea.vmem [#allocation22], %s858
        %s860 = smul.u32 4, %s44
        %p861 = scmp.lt.s32.totalorder %s860, 11
        %s862 = scalar_select %p861, %s860, 11
        %s863 = smul.addr %s862, 8
        %s864 = scalar_lea.vmem %s0, %s863
        %s865 = smul.u32 4, %s44
        %s866 = smul.u32 4, %s44
        %p867 = scmp.lt.s32.totalorder %s866, 11
        %s868 = scalar_select %p867, %s866, 11
        %s869 = smul.addr %s868, 8
        %s870 = scalar_lea.vmem %s1, %s869
        %s871 = smul.u32 4, %s44
        %s872 = smul.u32 4, %s44
        %s873 = smul.u32 4, %s44
        %v875 = vld [vmem:[%s864] sm:$0xff]
        %v876 = vld [vmem:[%s864 + $0x8] sm:$0xff]
        %v877 = vld [vmem:[%s864 + $0x10] sm:$0xff]
        %v878 = vld [vmem:[%s864 + $0x18] sm:$0xff]
        %v879 = vlaneseq
        %v880 = vand.u32 %v879, 127
        %881 = vset.pattern.permute.xlu0 0
        %882 = vperm.xlu0 %881, %v875
        %v883 = vpop.permute.xlu0 %882
        %884 = vset.pattern.permute.xlu0 0
        %885 = vperm.xlu0 %884, %v876
        %v886 = vpop.permute.xlu0 %885
        %887 = vset.pattern.permute.xlu0 0
        %888 = vperm.xlu0 %887, %v877
        %v889 = vpop.permute.xlu0 %888
        %890 = vset.pattern.permute.xlu0 0
        %891 = vperm.xlu0 %890, %v878
        %v892 = vpop.permute.xlu0 %891
        %vm893 = vcmp.eq.s32.totalorder %v880, %v883
        %vm894 = vcmp.eq.s32.totalorder %v880, %v886
        %vm895 = vcmp.eq.s32.totalorder %v880, %v889
        %vm896 = vcmp.eq.s32.totalorder %v880, %v892
        %v897 = vsel %vm893, 1, 0
        %v898 = vsel %vm894, 1, 0
        %v899 = vsel %vm895, 1, 0
        %v900 = vsel %vm896, 1, 0
        %v901 = vcvt.s32.f32 %v897
        %v902 = vcvt.s32.f32 %v898
        %v903 = vcvt.s32.f32 %v899
        %v904 = vcvt.s32.f32 %v900
        %v905 = vld [vmem:[#allocation5] sm:$0xff]
        %v906 = vld [vmem:[#allocation5 + $0x8] sm:$0x11]
        %v907 = vld [vmem:[#allocation7] sm:$0xff]
        %v908 = vld [vmem:[#allocation7 + $0x8] sm:$0xff]
        %v909 = vld [vmem:[#allocation7 + $0x10] sm:$0xff]
        %v910 = vld [vmem:[#allocation7 + $0x18] sm:$0xff]
        %v911 = vld [vmem:[#allocation7 + $0x20] sm:$0xff]
        %v912 = vld [vmem:[#allocation7 + $0x28] sm:$0xff]
        %v913 = vld [vmem:[#allocation7 + $0x30] sm:$0xff]
        %v914 = vld [vmem:[#allocation7 + $0x38] sm:$0xff]
        %v915 = vld [vmem:[#allocation7 + $0x40] sm:$0xff]
        %v916 = vld [vmem:[#allocation7 + $0x48] sm:$0xff]
        %v917 = vld [vmem:[#allocation7 + $0x50] sm:$0xff]
        %v918 = vld [vmem:[#allocation7 + $0x58] sm:$0xff]
        %v919 = vld [vmem:[#allocation7 + $0x60] sm:$0xff]
        %v920 = vld [vmem:[#allocation7 + $0x68] sm:$0xff]
        %v921 = vld [vmem:[#allocation7 + $0x70] sm:$0xff]
        %v922 = vld [vmem:[#allocation7 + $0x78] sm:$0xff]
        %v923 = vld [vmem:[#allocation7 + $0x80] sm:$0xff]
        %v924 = vld [vmem:[#allocation7 + $0x88] sm:$0xff]
        %v925 = vld [vmem:[#allocation7 + $0x90] sm:$0xff]
        %v926 = vld [vmem:[#allocation7 + $0x98] sm:$0xff]
        %v927 = vld [vmem:[#allocation7 + $0xa0] sm:$0xff]
        %v928 = vld [vmem:[#allocation7 + $0xa8] sm:$0xff]
        %v929 = vld [vmem:[#allocation7 + $0xb0] sm:$0xff]
        %v930 = vld [vmem:[#allocation7 + $0xb8] sm:$0xff]
        %v931 = vld [vmem:[#allocation7 + $0xc0] sm:$0xff]
        %v932 = vld [vmem:[#allocation7 + $0xc8] sm:$0xff]
        %v933 = vld [vmem:[#allocation7 + $0xd0] sm:$0xff]
        %v934 = vld [vmem:[#allocation7 + $0xd8] sm:$0xff]
        %v935 = vld [vmem:[#allocation7 + $0xe0] sm:$0xff]
        %v936 = vld [vmem:[#allocation7 + $0xe8] sm:$0xff]
        %v937 = vld [vmem:[#allocation7 + $0xf0] sm:$0xff]
        %v938 = vld [vmem:[#allocation7 + $0xf8] sm:$0xff]
        %v939 = vld [vmem:[%s5] sm:$0x3]
        %v940 = vld [vmem:[%s6] sm:$0x3]
        %v941 = vld [vmem:[#allocation8] sm:$0x3]
        %v942 = vld [vmem:[#allocation10] sm:$0xff]
        %v943 = vld [vmem:[#allocation10 + $0x8] sm:$0xff]
        %v944 = vld [vmem:[#allocation10 + $0x10] sm:$0xff]
        %v945 = vld [vmem:[#allocation10 + $0x18] sm:$0xff]
        %v946 = vld [vmem:[#allocation10 + $0x20] sm:$0x1f]
        %v947 = vld [vmem:[#allocation10 + $0x28] sm:$0x1f]
        %v948 = vld [vmem:[#allocation11] sm:$0xff]
        %v949 = vld [vmem:[#allocation11 + $0x8] sm:$0xff]
        %v950 = vld [vmem:[#allocation11 + $0x10] sm:$0xff]
        %v951 = vld [vmem:[#allocation11 + $0x18] sm:$0xff]
        %v952 = vld [vmem:[#allocation11 + $0x20] sm:$0xff]
        %v953 = vld [vmem:[#allocation11 + $0x28] sm:$0xff]
        %v954 = vld [vmem:[#allocation11 + $0x30] sm:$0xff]
        %v955 = vld [vmem:[#allocation11 + $0x38] sm:$0xff]
        %v956 = vld [vmem:[#allocation11 + $0x40] sm:$0xff]
        %v957 = vld [vmem:[#allocation11 + $0x48] sm:$0xff]
        %v958 = vld [vmem:[#allocation11 + $0x50] sm:$0xff]
        %v959 = vld [vmem:[#allocation11 + $0x58] sm:$0xff]
        %v960 = vld [vmem:[#allocation11 + $0x60] sm:$0xff]
        %v961 = vld [vmem:[#allocation11 + $0x68] sm:$0xff]
        %v962 = vld [vmem:[#allocation11 + $0x70] sm:$0xff]
        %v963 = vld [vmem:[#allocation11 + $0x78] sm:$0xff]
        %v964 = vld [vmem:[#allocation11 + $0x80] sm:$0xff]
        %v965 = vld [vmem:[#allocation11 + $0x88] sm:$0xff]
        %v966 = vld [vmem:[#allocation11 + $0x90] sm:$0xff]
        %v967 = vld [vmem:[#allocation11 + $0x98] sm:$0xff]
        %v968 = vld [vmem:[#allocation11 + $0xa0] sm:$0xff]
        %v969 = vld [vmem:[#allocation11 + $0xa8] sm:$0xff]
        %v970 = vld [vmem:[#allocation11 + $0xb0] sm:$0xff]
        %v971 = vld [vmem:[#allocation11 + $0xb8] sm:$0xff]
        %v972 = vld [vmem:[#allocation11 + $0xc0] sm:$0xff]
        %v973 = vld [vmem:[#allocation11 + $0xc8] sm:$0xff]
        %v974 = vld [vmem:[#allocation11 + $0xd0] sm:$0xff]
        %v975 = vld [vmem:[#allocation11 + $0xd8] sm:$0xff]
        %v976 = vld [vmem:[#allocation11 + $0xe0] sm:$0xff]
        %v977 = vld [vmem:[#allocation11 + $0xe8] sm:$0xff]
        %v978 = vld [vmem:[#allocation11 + $0xf0] sm:$0xff]
        %v979 = vld [vmem:[#allocation11 + $0xf8] sm:$0xff]
        %v980 = vld [vmem:[#allocation13] sm:$0x3]
        %v981 = vld [vmem:[#allocation14] sm:$0x3]
        %v982 = vld [vmem:[#allocation16] sm:$0x3]
        %v983 = vld [vmem:[#allocation17] sm:$0xff]
        %v984 = vld [vmem:[#allocation17 + $0x8] sm:$0xff]
        %v985 = vld [vmem:[#allocation17 + $0x10] sm:$0xff]
        %v986 = vld [vmem:[#allocation17 + $0x18] sm:$0xff]
        %v987 = vld [vmem:[#allocation17 + $0x20] sm:$0x1f]
        %v988 = vld [vmem:[#allocation17 + $0x28] sm:$0x1f]
        %v989 = vld [vmem:[%s14] sm:$0xff]
        %v990 = vld [vmem:[%s14 + $0x8] sm:$0xff]
        %v991 = vld [vmem:[%s14 + $0x10] sm:$0xff]
        %v992 = vld [vmem:[%s14 + $0x18] sm:$0xff]
        %v993 = vld [vmem:[%s14 + $0x20] sm:$0xff]
        %v994 = vld [vmem:[%s14 + $0x28] sm:$0xff]
        %v995 = vld [vmem:[%s14 + $0x30] sm:$0xff]
        %v996 = vld [vmem:[%s14 + $0x38] sm:$0xff]
        %v997 = vld [vmem:[%s14 + $0x40] sm:$0xff]
        %v998 = vld [vmem:[%s14 + $0x48] sm:$0xff]
        %v999 = vld [vmem:[%s14 + $0x50] sm:$0xff]
        %v1000 = vld [vmem:[%s14 + $0x58] sm:$0xff]
        %v1001 = vld [vmem:[%s14 + $0x60] sm:$0xff]
        %v1002 = vld [vmem:[%s14 + $0x68] sm:$0xff]
        %v1003 = vld [vmem:[%s14 + $0x70] sm:$0xff]
        %v1004 = vld [vmem:[%s14 + $0x78] sm:$0xff]
        %v1005 = vld [vmem:[%s14 + $0x80] sm:$0xff]
        %v1006 = vld [vmem:[%s14 + $0x88] sm:$0xff]
        %v1007 = vld [vmem:[%s14 + $0x90] sm:$0xff]
        %v1008 = vld [vmem:[%s14 + $0x98] sm:$0xff]
        %v1009 = vld [vmem:[%s14 + $0xa0] sm:$0xff]
        %v1010 = vld [vmem:[%s14 + $0xa8] sm:$0xff]
        %v1011 = vld [vmem:[%s14 + $0xb0] sm:$0xff]
        %v1012 = vld [vmem:[%s14 + $0xb8] sm:$0xff]
        %v1013 = vld [vmem:[%s14 + $0xc0] sm:$0xff]
        %v1014 = vld [vmem:[%s14 + $0xc8] sm:$0xff]
        %v1015 = vld [vmem:[%s14 + $0xd0] sm:$0xff]
        %v1016 = vld [vmem:[%s14 + $0xd8] sm:$0xff]
        %v1017 = vld [vmem:[%s14 + $0xe0] sm:$0xff]
        %v1018 = vld [vmem:[%s14 + $0xe8] sm:$0xff]
        %v1019 = vld [vmem:[%s14 + $0xf0] sm:$0xff]
        %v1020 = vld [vmem:[%s14 + $0xf8] sm:$0xff]
        %v1021 = vld [vmem:[%s15] sm:$0x3]
        %v1022 = vld [vmem:[%s16] sm:$0x3]
        %v1023 = vld [vmem:[%s17] sm:$0x3]
        %v1024 = vld [vmem:[#allocation19] sm:$0xff]
        %v1025 = vld [vmem:[#allocation19 + $0x8] sm:$0xff]
        %v1026 = vld [vmem:[#allocation19 + $0x10] sm:$0xff]
        %v1027 = vld [vmem:[#allocation19 + $0x18] sm:$0xff]
        %v1028 = vld [vmem:[#allocation19 + $0x20] sm:$0x1f]
        %v1029 = vld [vmem:[#allocation19 + $0x28] sm:$0x1f]
        %v1030 = vld [vmem:[#allocation20] sm:$0xf]
        %v1031 = vld [vmem:[#allocation20 + $0x4] sm:$0xf]
        %v1032 = vld [vmem:[#allocation20 + $0x8] sm:$0xf]
        %v1033 = vld [vmem:[#allocation20 + $0xc] sm:$0xf]
        %v1034 = vld [vmem:[#allocation20 + $0x10] sm:$0xf]
        %v1035 = vld [vmem:[#allocation20 + $0x14] sm:$0xf]
        %v1036 = vld [vmem:[#allocation20 + $0x18] sm:$0xf]
        %v1037 = vld [vmem:[#allocation20 + $0x1c] sm:$0xf]
        %v1038 = vld [vmem:[#allocation20 + $0x20] sm:$0xf]
        %v1039 = vld [vmem:[#allocation20 + $0x24] sm:$0xf]
        %v1040 = vld [vmem:[#allocation20 + $0x28] sm:$0xf]
        %v1041 = vld [vmem:[#allocation20 + $0x2c] sm:$0xf]
        %v1042 = vld [vmem:[#allocation20 + $0x30] sm:$0xf]
        %v1043 = vld [vmem:[#allocation20 + $0x34] sm:$0xf]
        %v1044 = vld [vmem:[#allocation20 + $0x38] sm:$0xf]
        %v1045 = vld [vmem:[#allocation20 + $0x3c] sm:$0xf]
        %v1046 = vld [vmem:[#allocation20 + $0x40] sm:$0xf]
        %v1047 = vld [vmem:[#allocation20 + $0x44] sm:$0xf]
        %v1048 = vld [vmem:[#allocation20 + $0x48] sm:$0xf]
        %v1049 = vld [vmem:[#allocation20 + $0x4c] sm:$0xf]
        %v1050 = vld [vmem:[#allocation20 + $0x50] sm:$0xf]
        %v1051 = vld [vmem:[#allocation20 + $0x54] sm:$0xf]
        %v1052 = vld [vmem:[#allocation20 + $0x58] sm:$0xf]
        %v1053 = vld [vmem:[#allocation20 + $0x5c] sm:$0xf]
        %v1054 = vld [vmem:[#allocation20 + $0x60] sm:$0xf]
        %v1055 = vld [vmem:[#allocation20 + $0x64] sm:$0xf]
        %v1056 = vld [vmem:[#allocation20 + $0x68] sm:$0xf]
        %v1057 = vld [vmem:[#allocation20 + $0x6c] sm:$0xf]
        %v1058 = vld [vmem:[#allocation20 + $0x70] sm:$0xf]
        %v1059 = vld [vmem:[#allocation20 + $0x74] sm:$0xf]
        %v1060 = vld [vmem:[#allocation20 + $0x78] sm:$0xf]
        %v1061 = vld [vmem:[#allocation20 + $0x7c] sm:$0xf]
        %v1062 = vld [vmem:[%s20] sm:$0x1]
        %v1063 = vld [vmem:[%s870] sm:$0xff]
        %v1064 = vld [vmem:[%s870 + $0x8] sm:$0xff]
        %v1065 = vld [vmem:[%s870 + $0x10] sm:$0xff]
        %v1066 = vld [vmem:[%s870 + $0x18] sm:$0xff]
        %v1067 = vld [vmem:[%s747] sm:$0xff]
        %v1068 = vld [vmem:[%s747 + $0x8] sm:$0xff]
        %v1069 = vld [vmem:[%s747 + $0x10] sm:$0xff]
        %v1070 = vld [vmem:[%s747 + $0x18] sm:$0xff]
        %v1071 = vld [vmem:[%s747 + $0x20] sm:$0xff]
        %v1072 = vld [vmem:[%s747 + $0x28] sm:$0xff]
        %v1073 = vld [vmem:[%s747 + $0x30] sm:$0xff]
        %v1074 = vld [vmem:[%s747 + $0x38] sm:$0xff]
        %v1075 = vpack.c.bf16 %v1064, %v1063
        %v1076 = vpack.c.bf16 %v1066, %v1065
        %v1077 = vpack.c.bf16 %v1069, %v1067
        %v1078 = vpack.c.bf16 %v1070, %v1068
        %v1079 = vpack.c.bf16 %v1073, %v1071
        %v1080 = vpack.c.bf16 %v1074, %v1072
        %vm1081 = vcmask 171008
        %v1083 = vsel %vm1081, %v901, 0
        %v1086 = vsel %vm1081, %v902, 0
        %v1089 = vsel %vm1081, %v903, 0
        %v1092 = vsel %vm1081, %v904, 0
        %vm1094 = vcmask 1044480
        %v1096 = vsel %vm1094, %v946, 0
        %v1099 = vsel %vm1094, %v947, 0
        %1101 = vmatprep.subr.mxu0 %v943
        %1102 = vmatpush1.msra.mxu0 %v942
        %1103 = vmatprep.subr.mxu0 %v945
        %1104 = vmatpush1.msra.mxu0 %v944
        %1105 = vmatprep.subr.mxu0 %v1099
        %1106 = vmatpush1.msra.mxu0 %v1096
        %1107 = vmatprep.subr.mxu0 0.0
        %1108 = vmatpush1.msra.mxu0 0.0
        %1109 = vmatprep.subr.mxu0 0.0
        %1110 = vmatpush1.msra.mxu0 0.0
        %1111 = vmatprep.subr.mxu0 0.0
        %1112 = vmatpush1.msra.mxu0 0.0
        %1113 = vmatprep.subr.mxu0 0.0
        %1114 = vmatpush1.msra.mxu0 0.0
        %1115 = vmatprep.subr.mxu0 0.0
        %1116 = vmatpush1.msra.mxu0 0.0
        %1117 = vmatprep.subr.mxu0 0.0
        %1118 = vmatpush1.msra.mxu0 0.0
        %1119 = vmatprep.subr.mxu0 0.0
        %1120 = vmatpush1.msra.mxu0 0.0
        %1121 = vmatprep.subr.mxu0 0.0
        %1122 = vmatpush1.msra.mxu0 0.0
        %1123 = vmatprep.subr.mxu0 0.0
        %1124 = vmatpush1.msra.mxu0 0.0
        %1125 = vmatprep.subr.mxu0 0.0
        %1126 = vmatpush1.msra.mxu0 0.0
        %1127 = vmatprep.subr.mxu0 0.0
        %1128 = vmatpush1.msra.mxu0 0.0
        %1129 = vmatprep.subr.mxu0 0.0
        %1130 = vmatpush1.msra.mxu0 0.0
        %1131 = vmatprep.subr.mxu0 0.0
        %1132 = vmatpush1.msra.mxu0 0.0
        %1133 = vmatprep.subr.mxu0 0.0
        %1134 = vmatpush1.msra.mxu0 0.0
        %1135 = vmatprep.subr.mxu0 0.0
        %1136 = vmatpush1.msra.mxu0 0.0
        %1137 = vmatprep.subr.mxu0 0.0
        %1138 = vmatpush1.msra.mxu0 0.0
        %1139 = vmatprep.subr.mxu0 0.0
        %1140 = vmatpush1.msra.mxu0 0.0
        %1141 = vmatprep.subr.mxu0 0.0
        %1142 = vmatpush1.msra.mxu0 0.0
        %1143 = vmatprep.subr.mxu0 0.0
        %1144 = vmatpush1.msra.mxu0 0.0
        %1145 = vmatprep.subr.mxu0 0.0
        %1146 = vmatpush1.msra.mxu0 0.0
        %1147 = vmatprep.subr.mxu0 0.0
        %1148 = vmatpush1.msra.mxu0 0.0
        %1149 = vmatprep.subr.mxu0 0.0
        %1150 = vmatpush1.msra.mxu0 0.0
        %1151 = vmatprep.subr.mxu0 0.0
        %1152 = vmatpush1.msra.mxu0 0.0
        %1153 = vmatprep.subr.mxu0 0.0
        %1154 = vmatpush1.msra.mxu0 0.0
        %1155 = vmatprep.subr.mxu0 0.0
        %1156 = vmatpush1.msra.mxu0 0.0
        %1157 = vmatprep.subr.mxu0 0.0
        %1158 = vmatpush1.msra.mxu0 0.0
        %1159 = vmatprep.subr.mxu0 0.0
        %1160 = vmatpush1.msra.mxu0 0.0
        %1161 = vmatprep.subr.mxu0 0.0
        %1162 = vmatpush1.msra.mxu0 0.0
        %1163 = vmatprep.subr.mxu0 0.0
        %1164 = vmatpush1.msra.mxu0 0.0
        %1165 = vmatprep.mubr.f32.mxu0 0.0
        %1166 = vmatmul.mubr.f32.gmra.mrb[0].mxu0 %v1083
        %v1167 = vpop.f32.mrb[0].mxu0
        %v1168 = vadd.f32 0.0, %v1167
        %v1169 = vpop.f32.mrb[0].mxu0
        %v1170 = vadd.f32 0.0, %v1169
        %1171 = vmatprep.mubr.f32.mxu0 0.0
        %1172 = vmatmul.mubr.f32.gmra.mrb[0].mxu0 %v1086
        %v1173 = vpop.f32.mrb[0].mxu0
        %v1174 = vadd.f32 0.0, %v1173
        %v1175 = vpop.f32.mrb[0].mxu0
        %v1176 = vadd.f32 0.0, %v1175
        %1177 = vmatprep.mubr.f32.mxu0 0.0
        %1178 = vmatmul.mubr.f32.gmra.mrb[0].mxu0 %v1089
        %v1179 = vpop.f32.mrb[0].mxu0
        %v1180 = vadd.f32 0.0, %v1179
        %v1181 = vpop.f32.mrb[0].mxu0
        %v1182 = vadd.f32 0.0, %v1181
        %1183 = vmatprep.mubr.f32.mxu0 0.0
        %1184 = vmatmul.mubr.f32.gmra.mrb[0].mxu0 %v1092
        %v1185 = vpop.f32.mrb[0].mxu0
        %v1186 = vadd.f32 0.0, %v1185
        %v1187 = vpop.f32.mrb[0].mxu0
        %v1188 = vadd.f32 0.0, %v1187
        %1189 = vdwg.mxu0
        %v1222 = vunpack.c.l.b16 %v907
        %v1223 = vunpack.c.h.b16 %v907
        %v1224 = vunpack.c.l.b16 %v908
        %v1225 = vunpack.c.h.b16 %v908
        %v1226 = vunpack.c.l.b16 %v909
        %v1227 = vunpack.c.h.b16 %v909
        %v1228 = vunpack.c.l.b16 %v910
        %v1229 = vunpack.c.h.b16 %v910
        %v1230 = vunpack.c.l.b16 %v911
        %v1231 = vunpack.c.h.b16 %v911
        %v1232 = vunpack.c.l.b16 %v912
        %v1233 = vunpack.c.h.b16 %v912
        %v1234 = vunpack.c.l.b16 %v913
        %v1235 = vunpack.c.h.b16 %v913
        %v1236 = vunpack.c.l.b16 %v914
        %v1237 = vunpack.c.h.b16 %v914
        %v1238 = vunpack.c.l.b16 %v915
        %v1239 = vunpack.c.h.b16 %v915
        %v1240 = vunpack.c.l.b16 %v916
        %v1241 = vunpack.c.h.b16 %v916
        %v1242 = vunpack.c.l.b16 %v917
        %v1243 = vunpack.c.h.b16 %v917
        %v1244 = vunpack.c.l.b16 %v918
        %v1245 = vunpack.c.h.b16 %v918
        %v1246 = vunpack.c.l.b16 %v919
        %v1247 = vunpack.c.h.b16 %v919
        %v1248 = vunpack.c.l.b16 %v920
        %v1249 = vunpack.c.h.b16 %v920
        %v1250 = vunpack.c.l.b16 %v921
        %v1251 = vunpack.c.h.b16 %v921
        %v1252 = vunpack.c.l.b16 %v922
        %v1253 = vunpack.c.h.b16 %v922
        %v1254 = vunpack.c.l.b16 %v923
        %v1255 = vunpack.c.h.b16 %v923
        %v1256 = vunpack.c.l.b16 %v924
        %v1257 = vunpack.c.h.b16 %v924
        %v1258 = vunpack.c.l.b16 %v925
        %v1259 = vunpack.c.h.b16 %v925
        %v1260 = vunpack.c.l.b16 %v926
        %v1261 = vunpack.c.h.b16 %v926
        %v1262 = vunpack.c.l.b16 %v927
        %v1263 = vunpack.c.h.b16 %v927
        %v1264 = vunpack.c.l.b16 %v928
        %v1265 = vunpack.c.h.b16 %v928
        %v1266 = vunpack.c.l.b16 %v929
        %v1267 = vunpack.c.h.b16 %v929
        %v1268 = vunpack.c.l.b16 %v930
        %v1269 = vunpack.c.h.b16 %v930
        %v1270 = vunpack.c.l.b16 %v931
        %v1271 = vunpack.c.h.b16 %v931
        %v1272 = vunpack.c.l.b16 %v932
        %v1273 = vunpack.c.h.b16 %v932
        %v1274 = vunpack.c.l.b16 %v933
        %v1275 = vunpack.c.h.b16 %v933
        %v1276 = vunpack.c.l.b16 %v934
        %v1277 = vunpack.c.h.b16 %v934
        %v1278 = vunpack.c.l.b16 %v935
        %v1279 = vunpack.c.h.b16 %v935
        %v1280 = vunpack.c.l.b16 %v936
        %v1281 = vunpack.c.h.b16 %v936
        %v1282 = vunpack.c.l.b16 %v937
        %v1283 = vunpack.c.h.b16 %v937
        %v1284 = vunpack.c.l.b16 %v938
        %v1285 = vunpack.c.h.b16 %v938
        %v1286 = vpack.c.b16 %v1224, %v1222
        %v1287 = vpack.c.b16 %v1225, %v1223
        %v1288 = vpack.c.b16 %v1228, %v1226
        %v1289 = vpack.c.b16 %v1229, %v1227
        %v1290 = vpack.c.b16 %v1232, %v1230
        %v1291 = vpack.c.b16 %v1233, %v1231
        %v1292 = vpack.c.b16 %v1236, %v1234
        %v1293 = vpack.c.b16 %v1237, %v1235
        %v1294 = vpack.c.b16 %v1240, %v1238
        %v1295 = vpack.c.b16 %v1241, %v1239
        %v1296 = vpack.c.b16 %v1244, %v1242
        %v1297 = vpack.c.b16 %v1245, %v1243
        %v1298 = vpack.c.b16 %v1248, %v1246
        %v1299 = vpack.c.b16 %v1249, %v1247
        %v1300 = vpack.c.b16 %v1252, %v1250
        %v1301 = vpack.c.b16 %v1253, %v1251
        %v1302 = vpack.c.b16 %v1256, %v1254
        %v1303 = vpack.c.b16 %v1257, %v1255
        %v1304 = vpack.c.b16 %v1260, %v1258
        %v1305 = vpack.c.b16 %v1261, %v1259
        %v1306 = vpack.c.b16 %v1264, %v1262
        %v1307 = vpack.c.b16 %v1265, %v1263
        %v1308 = vpack.c.b16 %v1268, %v1266
        %v1309 = vpack.c.b16 %v1269, %v1267
        %v1310 = vpack.c.b16 %v1272, %v1270
        %v1311 = vpack.c.b16 %v1273, %v1271
        %v1312 = vpack.c.b16 %v1276, %v1274
        %v1313 = vpack.c.b16 %v1277, %v1275
        %v1314 = vpack.c.b16 %v1280, %v1278
        %v1315 = vpack.c.b16 %v1281, %v1279
        %v1316 = vpack.c.b16 %v1284, %v1282
        %v1317 = vpack.c.b16 %v1285, %v1283
        %1350 = vmatprep.subr.bf16.mxu0 %v1287
        %1351 = vmatpush1.bf16.msra.mxu0 %v1286
        %1352 = vmatprep.subr.bf16.mxu0 %v1289
        %1353 = vmatpush1.bf16.msra.mxu0 %v1288
        %1354 = vmatprep.subr.bf16.mxu0 %v1291
        %1355 = vmatpush1.bf16.msra.mxu0 %v1290
        %1356 = vmatprep.subr.bf16.mxu0 %v1293
        %1357 = vmatpush1.bf16.msra.mxu0 %v1292
        %1358 = vmatprep.subr.bf16.mxu0 %v1295
        %1359 = vmatpush1.bf16.msra.mxu0 %v1294
        %1360 = vmatprep.subr.bf16.mxu0 %v1297
        %1361 = vmatpush1.bf16.msra.mxu0 %v1296
        %1362 = vmatprep.subr.bf16.mxu0 %v1299
        %1363 = vmatpush1.bf16.msra.mxu0 %v1298
        %1364 = vmatprep.subr.bf16.mxu0 %v1301
        %1365 = vmatpush1.bf16.msra.mxu0 %v1300
        %1366 = vmatprep.subr.bf16.mxu0 %v1303
        %1367 = vmatpush1.bf16.msra.mxu0 %v1302
        %1368 = vmatprep.subr.bf16.mxu0 %v1305
        %1369 = vmatpush1.bf16.msra.mxu0 %v1304
        %1370 = vmatprep.subr.bf16.mxu0 %v1307
        %1371 = vmatpush1.bf16.msra.mxu0 %v1306
        %1372 = vmatprep.subr.bf16.mxu0 %v1309
        %1373 = vmatpush1.bf16.msra.mxu0 %v1308
        %1374 = vmatprep.subr.bf16.mxu0 %v1311
        %1375 = vmatpush1.bf16.msra.mxu0 %v1310
        %1376 = vmatprep.subr.bf16.mxu0 %v1313
        %1377 = vmatpush1.bf16.msra.mxu0 %v1312
        %1378 = vmatprep.subr.bf16.mxu0 %v1315
        %1379 = vmatpush1.bf16.msra.mxu0 %v1314
        %1380 = vmatprep.subr.bf16.mxu0 %v1317
        %1381 = vmatpush1.bf16.msra.mxu0 %v1316
        %1382 = vmatprep.mubr.bf16.mxu0 %v1078
        %1383 = vmatmul.mubr.bf16.gmra.mrb[0].mxu0 %v1077
        %v1384 = vpop.f32.mrb[0].mxu0
        %v1385 = vadd.f32 0.0, %v1384
        %v1386 = vpop.f32.mrb[0].mxu0
        %v1387 = vadd.f32 0.0, %v1386
        %v1388 = vpop.f32.mrb[0].mxu0
        %v1389 = vadd.f32 0.0, %v1388
        %v1390 = vpop.f32.mrb[0].mxu0
        %v1391 = vadd.f32 0.0, %v1390
        %1392 = vmatprep.mubr.bf16.mxu0 %v1080
        %1393 = vmatmul.mubr.bf16.gmra.mrb[0].mxu0 %v1079
        %v1394 = vpop.f32.mrb[0].mxu0
        %v1395 = vadd.f32 0.0, %v1394
        %v1396 = vpop.f32.mrb[0].mxu0
        %v1397 = vadd.f32 0.0, %v1396
        %v1398 = vpop.f32.mrb[0].mxu0
        %v1399 = vadd.f32 0.0, %v1398
        %v1400 = vpop.f32.mrb[0].mxu0
        %v1401 = vadd.f32 0.0, %v1400
        %1402 = vdwg.mxu0
        %v1405 = vunpack.c.l.b16 %v905
        %v1406 = vunpack.c.h.b16 %v905
        %v1407 = vunpack.c.l.b16 %v906
        %v1408 = vunpack.c.h.b16 %v906
        %v1409 = vpack.c.b16 %v1407, %v1405
        %v1410 = vpack.c.b16 %v1408, %v1406
        %vm1411 = vcmask 80896
        %v1413 = vsel %vm1411, %v1075, 0
        %v1416 = vsel %vm1411, %v1076, 0
        %v1419 = vsel %vm1094, %v1409, 0
        %v1422 = vsel %vm1094, %v1410, 0
        %1424 = vmatprep.subr.bf16.mxu0 %v1422
        %1425 = vmatpush1.bf16.msra.mxu0 %v1419
        %1426 = vmatprep.subr.bf16.mxu0 0
        %1427 = vmatpush1.bf16.msra.mxu0 0
        %1428 = vmatprep.subr.bf16.mxu0 0
        %1429 = vmatpush1.bf16.msra.mxu0 0
        %1430 = vmatprep.subr.bf16.mxu0 0
        %1431 = vmatpush1.bf16.msra.mxu0 0
        %1432 = vmatprep.subr.bf16.mxu0 0
        %1433 = vmatpush1.bf16.msra.mxu0 0
        %1434 = vmatprep.subr.bf16.mxu0 0
        %1435 = vmatpush1.bf16.msra.mxu0 0
        %1436 = vmatprep.subr.bf16.mxu0 0
        %1437 = vmatpush1.bf16.msra.mxu0 0
        %1438 = vmatprep.subr.bf16.mxu0 0
        %1439 = vmatpush1.bf16.msra.mxu0 0
        %1440 = vmatprep.subr.bf16.mxu0 0
        %1441 = vmatpush1.bf16.msra.mxu0 0
        %1442 = vmatprep.subr.bf16.mxu0 0
        %1443 = vmatpush1.bf16.msra.mxu0 0
        %1444 = vmatprep.subr.bf16.mxu0 0
        %1445 = vmatpush1.bf16.msra.mxu0 0
        %1446 = vmatprep.subr.bf16.mxu0 0
        %1447 = vmatpush1.bf16.msra.mxu0 0
        %1448 = vmatprep.subr.bf16.mxu0 0
        %1449 = vmatpush1.bf16.msra.mxu0 0
        %1450 = vmatprep.subr.bf16.mxu0 0
        %1451 = vmatpush1.bf16.msra.mxu0 0
        %1452 = vmatprep.subr.bf16.mxu0 0
        %1453 = vmatpush1.bf16.msra.mxu0 0
        %1454 = vmatprep.subr.bf16.mxu0 0
        %1455 = vmatpush1.bf16.msra.mxu0 0
        %1456 = vmatprep.mubr.bf16.mxu0 0
        %1457 = vmatmul.mubr.bf16.gmra.mrb[0].mxu0 %v1413
        %v1458 = vpop.f32.mrb[0].mxu0
        %v1459 = vadd.f32 %v1385, %v1458
        %v1460 = vpop.f32.mrb[0].mxu0
        %v1461 = vadd.f32 %v1387, %v1460
        %v1462 = vpop.f32.mrb[0].mxu0
        %v1463 = vadd.f32 %v1389, %v1462
        %v1464 = vpop.f32.mrb[0].mxu0
        %v1465 = vadd.f32 %v1391, %v1464
        %1466 = vmatprep.mubr.bf16.mxu0 0
        %1467 = vmatmul.mubr.bf16.gmra.mrb[0].mxu0 %v1416
        %v1468 = vpop.f32.mrb[0].mxu0
        %v1469 = vadd.f32 %v1395, %v1468
        %v1470 = vpop.f32.mrb[0].mxu0
        %v1471 = vadd.f32 %v1397, %v1470
        %v1472 = vpop.f32.mrb[0].mxu0
        %v1473 = vadd.f32 %v1399, %v1472
        %v1474 = vpop.f32.mrb[0].mxu0
        %v1475 = vadd.f32 %v1401, %v1474
        %1476 = vdwg.mxu0
        %v1478 = vlaneseq
        %v1479 = vshrl.u32 %v1478, 7
        %v1480 = vsub.s32 0, %v1479
        %v1481 = vrot.slane %v939, %v1480
        %v1482 = vlaneseq
        %v1483 = vshrl.u32 %v1482, 7
        %v1484 = vsub.s32 1, %v1483
        %v1485 = vrot.slane %v939, %v1484
        %v1488 = vadd.f32 %v1459, %v1481
        %v1489 = vadd.f32 %v1461, %v1485
        %v1490 = vadd.f32 %v1463, %v1481
        %v1491 = vadd.f32 %v1465, %v1485
        %v1492 = vadd.f32 %v1469, %v1481
        %v1493 = vadd.f32 %v1471, %v1485
        %v1494 = vadd.f32 %v1473, %v1481
        %v1495 = vadd.f32 %v1475, %v1485
        %v1496 = vmul.f32 %v1168, %v1488
        %v1497 = vmul.f32 %v1170, %v1489
        %v1498 = vmul.f32 %v1174, %v1490
        %v1499 = vmul.f32 %v1176, %v1491
        %v1500 = vmul.f32 %v1180, %v1492
        %v1501 = vmul.f32 %v1182, %v1493
        %v1502 = vmul.f32 %v1186, %v1494
        %v1503 = vmul.f32 %v1188, %v1495
        %v1505 = vlaneseq
        %v1506 = vshrl.u32 %v1505, 7
        %v1507 = vsub.s32 0, %v1506
        %v1508 = vrot.slane %v940, %v1507
        %v1509 = vlaneseq
        %v1510 = vshrl.u32 %v1509, 7
        %v1511 = vsub.s32 1, %v1510
        %v1512 = vrot.slane %v940, %v1511
        %v1515 = vmul.f32 %v1496, %v1508
        %v1516 = vmul.f32 %v1497, %v1512
        %v1517 = vmul.f32 %v1498, %v1508
        %v1518 = vmul.f32 %v1499, %v1512
        %v1519 = vmul.f32 %v1500, %v1508
        %v1520 = vmul.f32 %v1501, %v1512
        %v1521 = vmul.f32 %v1502, %v1508
        %v1522 = vmul.f32 %v1503, %v1512
        %v1524 = vlaneseq
        %v1525 = vshrl.u32 %v1524, 7
        %v1526 = vsub.s32 0, %v1525
        %v1527 = vrot.slane %v941, %v1526
        %v1528 = vlaneseq
        %v1529 = vshrl.u32 %v1528, 7
        %v1530 = vsub.s32 1, %v1529
        %v1531 = vrot.slane %v941, %v1530
        %v1534 = vadd.f32 %v1515, %v1527
        %v1535 = vadd.f32 %v1516, %v1531
        %v1536 = vadd.f32 %v1517, %v1527
        %v1537 = vadd.f32 %v1518, %v1531
        %v1538 = vadd.f32 %v1519, %v1527
        %v1539 = vadd.f32 %v1520, %v1531
        %v1540 = vadd.f32 %v1521, %v1527
        %v1541 = vadd.f32 %v1522, %v1531
        %v1542 = vmax.f32 %v1534, 0.0
        %v1543 = vmax.f32 %v1535, 0.0
        %v1544 = vmax.f32 %v1536, 0.0
        %v1545 = vmax.f32 %v1537, 0.0
        %v1546 = vmax.f32 %v1538, 0.0
        %v1547 = vmax.f32 %v1539, 0.0
        %v1548 = vmax.f32 %v1540, 0.0
        %v1549 = vmax.f32 %v1541, 0.0
        %v1550 = vand.u32 2147483647, %v1534
        %v1551 = vand.u32 2147483647, %v1535
        %v1552 = vand.u32 2147483647, %v1536
        %v1553 = vand.u32 2147483647, %v1537
        %v1554 = vand.u32 2147483647, %v1538
        %v1555 = vand.u32 2147483647, %v1539
        %v1556 = vand.u32 2147483647, %v1540
        %v1557 = vand.u32 2147483647, %v1541
        %v1558 = vsub.f32 0.0, %v1550
        %v1559 = vsub.f32 0.0, %v1551
        %v1560 = vsub.f32 0.0, %v1552
        %v1561 = vsub.f32 0.0, %v1553
        %v1562 = vsub.f32 0.0, %v1554
        %v1563 = vsub.f32 0.0, %v1555
        %v1564 = vsub.f32 0.0, %v1556
        %v1565 = vsub.f32 0.0, %v1557
        %v1566 = vmul.f32 %v1558, 1.442695
        %v1567 = vpow.pop %v1566
        %v1568 = vmul.f32 %v1559, 1.442695
        %v1569 = vpow.pop %v1568
        %v1570 = vmul.f32 %v1560, 1.442695
        %v1571 = vpow.pop %v1570
        %v1572 = vmul.f32 %v1561, 1.442695
        %v1573 = vpow.pop %v1572
        %v1574 = vmul.f32 %v1562, 1.442695
        %v1575 = vpow.pop %v1574
        %v1576 = vmul.f32 %v1563, 1.442695
        %v1577 = vpow.pop %v1576
        %v1578 = vmul.f32 %v1564, 1.442695
        %v1579 = vpow.pop %v1578
        %v1580 = vmul.f32 %v1565, 1.442695
        %v1581 = vpow.pop %v1580
        %v1582 = vadd.f32 %v1567, 1.0
        %v1583 = vadd.f32 %v1569, 1.0
        %v1584 = vadd.f32 %v1571, 1.0
        %v1585 = vadd.f32 %v1573, 1.0
        %v1586 = vadd.f32 %v1575, 1.0
        %v1587 = vadd.f32 %v1577, 1.0
        %v1588 = vadd.f32 %v1579, 1.0
        %v1589 = vadd.f32 %v1581, 1.0
        %v1590 = vlog2.pop %v1582
        %v1591 = vmul.f32 %v1590, 0.6931472
        %v1592 = vlog2.pop %v1583
        %v1593 = vmul.f32 %v1592, 0.6931472
        %v1594 = vlog2.pop %v1584
        %v1595 = vmul.f32 %v1594, 0.6931472
        %v1596 = vlog2.pop %v1585
        %v1597 = vmul.f32 %v1596, 0.6931472
        %v1598 = vlog2.pop %v1586
        %v1599 = vmul.f32 %v1598, 0.6931472
        %v1600 = vlog2.pop %v1587
        %v1601 = vmul.f32 %v1600, 0.6931472
        %v1602 = vlog2.pop %v1588
        %v1603 = vmul.f32 %v1602, 0.6931472
        %v1604 = vlog2.pop %v1589
        %v1605 = vmul.f32 %v1604, 0.6931472
        %v1606 = vadd.f32 %v1542, %v1591
        %v1607 = vadd.f32 %v1543, %v1593
        %v1608 = vadd.f32 %v1544, %v1595
        %v1609 = vadd.f32 %v1545, %v1597
        %v1610 = vadd.f32 %v1546, %v1599
        %v1611 = vadd.f32 %v1547, %v1601
        %v1612 = vadd.f32 %v1548, %v1603
        %v1613 = vadd.f32 %v1549, %v1605
        %v1614 = vmul.f32 %v1606, %v1067
        %v1615 = vmul.f32 %v1607, %v1068
        %v1616 = vmul.f32 %v1608, %v1069
        %v1617 = vmul.f32 %v1609, %v1070
        %v1618 = vmul.f32 %v1610, %v1071
        %v1619 = vmul.f32 %v1611, %v1072
        %v1620 = vmul.f32 %v1612, %v1073
        %v1621 = vmul.f32 %v1613, %v1074
        %v1623 = vsel %vm1094, %v987, 0
        %v1626 = vsel %vm1094, %v988, 0
        %1628 = vmatprep.subr.mxu0 %v984
        %1629 = vmatpush1.msra.mxu0 %v983
        %1630 = vmatprep.subr.mxu0 %v986
        %1631 = vmatpush1.msra.mxu0 %v985
        %1632 = vmatprep.subr.mxu0 %v1626
        %1633 = vmatpush1.msra.mxu0 %v1623
        %1634 = vmatprep.subr.mxu0 0.0
        %1635 = vmatpush1.msra.mxu0 0.0
        %1636 = vmatprep.subr.mxu0 0.0
        %1637 = vmatpush1.msra.mxu0 0.0
        %1638 = vmatprep.subr.mxu0 0.0
        %1639 = vmatpush1.msra.mxu0 0.0
        %1640 = vmatprep.subr.mxu0 0.0
        %1641 = vmatpush1.msra.mxu0 0.0
        %1642 = vmatprep.subr.mxu0 0.0
        %1643 = vmatpush1.msra.mxu0 0.0
        %1644 = vmatprep.subr.mxu0 0.0
        %1645 = vmatpush1.msra.mxu0 0.0
        %1646 = vmatprep.subr.mxu0 0.0
        %1647 = vmatpush1.msra.mxu0 0.0
        %1648 = vmatprep.subr.mxu0 0.0
        %1649 = vmatpush1.msra.mxu0 0.0
        %1650 = vmatprep.subr.mxu0 0.0
        %1651 = vmatpush1.msra.mxu0 0.0
        %1652 = vmatprep.subr.mxu0 0.0
        %1653 = vmatpush1.msra.mxu0 0.0
        %1654 = vmatprep.subr.mxu0 0.0
        %1655 = vmatpush1.msra.mxu0 0.0
        %1656 = vmatprep.subr.mxu0 0.0
        %1657 = vmatpush1.msra.mxu0 0.0
        %1658 = vmatprep.subr.mxu0 0.0
        %1659 = vmatpush1.msra.mxu0 0.0
        %1660 = vmatprep.subr.mxu0 0.0
        %1661 = vmatpush1.msra.mxu0 0.0
        %1662 = vmatprep.subr.mxu0 0.0
        %1663 = vmatpush1.msra.mxu0 0.0
        %1664 = vmatprep.subr.mxu0 0.0
        %1665 = vmatpush1.msra.mxu0 0.0
        %1666 = vmatprep.subr.mxu0 0.0
        %1667 = vmatpush1.msra.mxu0 0.0
        %1668 = vmatprep.subr.mxu0 0.0
        %1669 = vmatpush1.msra.mxu0 0.0
        %1670 = vmatprep.subr.mxu0 0.0
        %1671 = vmatpush1.msra.mxu0 0.0
        %1672 = vmatprep.subr.mxu0 0.0
        %1673 = vmatpush1.msra.mxu0 0.0
        %1674 = vmatprep.subr.mxu0 0.0
        %1675 = vmatpush1.msra.mxu0 0.0
        %1676 = vmatprep.subr.mxu0 0.0
        %1677 = vmatpush1.msra.mxu0 0.0
        %1678 = vmatprep.subr.mxu0 0.0
        %1679 = vmatpush1.msra.mxu0 0.0
        %1680 = vmatprep.subr.mxu0 0.0
        %1681 = vmatpush1.msra.mxu0 0.0
        %1682 = vmatprep.subr.mxu0 0.0
        %1683 = vmatpush1.msra.mxu0 0.0
        %1684 = vmatprep.subr.mxu0 0.0
        %1685 = vmatpush1.msra.mxu0 0.0
        %1686 = vmatprep.subr.mxu0 0.0
        %1687 = vmatpush1.msra.mxu0 0.0
        %1688 = vmatprep.subr.mxu0 0.0
        %1689 = vmatpush1.msra.mxu0 0.0
        %1690 = vmatprep.subr.mxu0 0.0
        %1691 = vmatpush1.msra.mxu0 0.0
        %1692 = vmatprep.mubr.f32.mxu0 0.0
        %1693 = vmatmul.mubr.f32.gmra.mrb[0].mxu0 %v1083
        %v1694 = vpop.f32.mrb[0].mxu0
        %v1695 = vadd.f32 0.0, %v1694
        %v1696 = vpop.f32.mrb[0].mxu0
        %v1697 = vadd.f32 0.0, %v1696
        %1698 = vmatprep.mubr.f32.mxu0 0.0
        %1699 = vmatmul.mubr.f32.gmra.mrb[0].mxu0 %v1086
        %v1700 = vpop.f32.mrb[0].mxu0
        %v1701 = vadd.f32 0.0, %v1700
        %v1702 = vpop.f32.mrb[0].mxu0
        %v1703 = vadd.f32 0.0, %v1702
        %1704 = vmatprep.mubr.f32.mxu0 0.0
        %1705 = vmatmul.mubr.f32.gmra.mrb[0].mxu0 %v1089
        %v1706 = vpop.f32.mrb[0].mxu0
        %v1707 = vadd.f32 0.0, %v1706
        %v1708 = vpop.f32.mrb[0].mxu0
        %v1709 = vadd.f32 0.0, %v1708
        %1710 = vmatprep.mubr.f32.mxu0 0.0
        %1711 = vmatmul.mubr.f32.gmra.mrb[0].mxu0 %v1092
        %v1712 = vpop.f32.mrb[0].mxu0
        %v1713 = vadd.f32 0.0, %v1712
        %v1714 = vpop.f32.mrb[0].mxu0
        %v1715 = vadd.f32 0.0, %v1714
        %1716 = vdwg.mxu0
        %v1717 = vpack.c.bf16 %v1616, %v1614
        %v1718 = vpack.c.bf16 %v1617, %v1615
        %v1719 = vpack.c.bf16 %v1620, %v1618
        %v1720 = vpack.c.bf16 %v1621, %v1619
        %v1722 = vlaneseq
        %v1723 = vshrl.u32 %v1722, 7
        %v1724 = vsub.s32 0, %v1723
        %v1725 = vrot.slane %v980, %v1724
        %v1726 = vlaneseq
        %v1727 = vshrl.u32 %v1726, 7
        %v1728 = vsub.s32 1, %v1727
        %v1729 = vrot.slane %v980, %v1728
        %v1764 = vunpack.c.l.b16 %v948
        %v1765 = vunpack.c.h.b16 %v948
        %v1766 = vunpack.c.l.b16 %v949
        %v1767 = vunpack.c.h.b16 %v949
        %v1768 = vunpack.c.l.b16 %v950
        %v1769 = vunpack.c.h.b16 %v950
        %v1770 = vunpack.c.l.b16 %v951
        %v1771 = vunpack.c.h.b16 %v951
        %v1772 = vunpack.c.l.b16 %v952
        %v1773 = vunpack.c.h.b16 %v952
        %v1774 = vunpack.c.l.b16 %v953
        %v1775 = vunpack.c.h.b16 %v953
        %v1776 = vunpack.c.l.b16 %v954
        %v1777 = vunpack.c.h.b16 %v954
        %v1778 = vunpack.c.l.b16 %v955
        %v1779 = vunpack.c.h.b16 %v955
        %v1780 = vunpack.c.l.b16 %v956
        %v1781 = vunpack.c.h.b16 %v956
        %v1782 = vunpack.c.l.b16 %v957
        %v1783 = vunpack.c.h.b16 %v957
        %v1784 = vunpack.c.l.b16 %v958
        %v1785 = vunpack.c.h.b16 %v958
        %v1786 = vunpack.c.l.b16 %v959
        %v1787 = vunpack.c.h.b16 %v959
        %v1788 = vunpack.c.l.b16 %v960
        %v1789 = vunpack.c.h.b16 %v960
        %v1790 = vunpack.c.l.b16 %v961
        %v1791 = vunpack.c.h.b16 %v961
        %v1792 = vunpack.c.l.b16 %v962
        %v1793 = vunpack.c.h.b16 %v962
        %v1794 = vunpack.c.l.b16 %v963
        %v1795 = vunpack.c.h.b16 %v963
        %v1796 = vunpack.c.l.b16 %v964
        %v1797 = vunpack.c.h.b16 %v964
        %v1798 = vunpack.c.l.b16 %v965
        %v1799 = vunpack.c.h.b16 %v965
        %v1800 = vunpack.c.l.b16 %v966
        %v1801 = vunpack.c.h.b16 %v966
        %v1802 = vunpack.c.l.b16 %v967
        %v1803 = vunpack.c.h.b16 %v967
        %v1804 = vunpack.c.l.b16 %v968
        %v1805 = vunpack.c.h.b16 %v968
        %v1806 = vunpack.c.l.b16 %v969
        %v1807 = vunpack.c.h.b16 %v969
        %v1808 = vunpack.c.l.b16 %v970
        %v1809 = vunpack.c.h.b16 %v970
        %v1810 = vunpack.c.l.b16 %v971
        %v1811 = vunpack.c.h.b16 %v971
        %v1812 = vunpack.c.l.b16 %v972
        %v1813 = vunpack.c.h.b16 %v972
        %v1814 = vunpack.c.l.b16 %v973
        %v1815 = vunpack.c.h.b16 %v973
        %v1816 = vunpack.c.l.b16 %v974
        %v1817 = vunpack.c.h.b16 %v974
        %v1818 = vunpack.c.l.b16 %v975
        %v1819 = vunpack.c.h.b16 %v975
        %v1820 = vunpack.c.l.b16 %v976
        %v1821 = vunpack.c.h.b16 %v976
        %v1822 = vunpack.c.l.b16 %v977
        %v1823 = vunpack.c.h.b16 %v977
        %v1824 = vunpack.c.l.b16 %v978
        %v1825 = vunpack.c.h.b16 %v978
        %v1826 = vunpack.c.l.b16 %v979
        %v1827 = vunpack.c.h.b16 %v979
        %v1828 = vpack.c.b16 %v1766, %v1764
        %v1829 = vpack.c.b16 %v1767, %v1765
        %v1830 = vpack.c.b16 %v1770, %v1768
        %v1831 = vpack.c.b16 %v1771, %v1769
        %v1832 = vpack.c.b16 %v1774, %v1772
        %v1833 = vpack.c.b16 %v1775, %v1773
        %v1834 = vpack.c.b16 %v1778, %v1776
        %v1835 = vpack.c.b16 %v1779, %v1777
        %v1836 = vpack.c.b16 %v1782, %v1780
        %v1837 = vpack.c.b16 %v1783, %v1781
        %v1838 = vpack.c.b16 %v1786, %v1784
        %v1839 = vpack.c.b16 %v1787, %v1785
        %v1840 = vpack.c.b16 %v1790, %v1788
        %v1841 = vpack.c.b16 %v1791, %v1789
        %v1842 = vpack.c.b16 %v1794, %v1792
        %v1843 = vpack.c.b16 %v1795, %v1793
        %v1844 = vpack.c.b16 %v1798, %v1796
        %v1845 = vpack.c.b16 %v1799, %v1797
        %v1846 = vpack.c.b16 %v1802, %v1800
        %v1847 = vpack.c.b16 %v1803, %v1801
        %v1848 = vpack.c.b16 %v1806, %v1804
        %v1849 = vpack.c.b16 %v1807, %v1805
        %v1850 = vpack.c.b16 %v1810, %v1808
        %v1851 = vpack.c.b16 %v1811, %v1809
        %v1852 = vpack.c.b16 %v1814, %v1812
        %v1853 = vpack.c.b16 %v1815, %v1813
        %v1854 = vpack.c.b16 %v1818, %v1816
        %v1855 = vpack.c.b16 %v1819, %v1817
        %v1856 = vpack.c.b16 %v1822, %v1820
        %v1857 = vpack.c.b16 %v1823, %v1821
        %v1858 = vpack.c.b16 %v1826, %v1824
        %v1859 = vpack.c.b16 %v1827, %v1825
        %1892 = vmatprep.subr.bf16.mxu0 %v1829
        %1893 = vmatpush1.bf16.msra.mxu0 %v1828
        %1894 = vmatprep.subr.bf16.mxu0 %v1831
        %1895 = vmatpush1.bf16.msra.mxu0 %v1830
        %1896 = vmatprep.subr.bf16.mxu0 %v1833
        %1897 = vmatpush1.bf16.msra.mxu0 %v1832
        %1898 = vmatprep.subr.bf16.mxu0 %v1835
        %1899 = vmatpush1.bf16.msra.mxu0 %v1834
        %1900 = vmatprep.subr.bf16.mxu0 %v1837
        %1901 = vmatpush1.bf16.msra.mxu0 %v1836
        %1902 = vmatprep.subr.bf16.mxu0 %v1839
        %1903 = vmatpush1.bf16.msra.mxu0 %v1838
        %1904 = vmatprep.subr.bf16.mxu0 %v1841
        %1905 = vmatpush1.bf16.msra.mxu0 %v1840
        %1906 = vmatprep.subr.bf16.mxu0 %v1843
        %1907 = vmatpush1.bf16.msra.mxu0 %v1842
        %1908 = vmatprep.subr.bf16.mxu0 %v1845
        %1909 = vmatpush1.bf16.msra.mxu0 %v1844
        %1910 = vmatprep.subr.bf16.mxu0 %v1847
        %1911 = vmatpush1.bf16.msra.mxu0 %v1846
        %1912 = vmatprep.subr.bf16.mxu0 %v1849
        %1913 = vmatpush1.bf16.msra.mxu0 %v1848
        %1914 = vmatprep.subr.bf16.mxu0 %v1851
        %1915 = vmatpush1.bf16.msra.mxu0 %v1850
        %1916 = vmatprep.subr.bf16.mxu0 %v1853
        %1917 = vmatpush1.bf16.msra.mxu0 %v1852
        %1918 = vmatprep.subr.bf16.mxu0 %v1855
        %1919 = vmatpush1.bf16.msra.mxu0 %v1854
        %1920 = vmatprep.subr.bf16.mxu0 %v1857
        %1921 = vmatpush1.bf16.msra.mxu0 %v1856
        %1922 = vmatprep.subr.bf16.mxu0 %v1859
        %1923 = vmatpush1.bf16.msra.mxu0 %v1858
        %1924 = vmatprep.mubr.bf16.mxu0 %v1718
        %1925 = vmatmul.mubr.bf16.gmra.mrb[0].mxu0 %v1717
        %v1926 = vpop.f32.mrb[0].mxu0
        %v1927 = vadd.f32 %v1725, %v1926
        %v1928 = vpop.f32.mrb[0].mxu0
        %v1929 = vadd.f32 %v1729, %v1928
        %v1930 = vpop.f32.mrb[0].mxu0
        %v1931 = vadd.f32 %v1725, %v1930
        %v1932 = vpop.f32.mrb[0].mxu0
        %v1933 = vadd.f32 %v1729, %v1932
        %1934 = vmatprep.mubr.bf16.mxu0 %v1720
        %1935 = vmatmul.mubr.bf16.gmra.mrb[0].mxu0 %v1719
        %v1936 = vpop.f32.mrb[0].mxu0
        %v1937 = vadd.f32 %v1725, %v1936
        %v1938 = vpop.f32.mrb[0].mxu0
        %v1939 = vadd.f32 %v1729, %v1938
        %v1940 = vpop.f32.mrb[0].mxu0
        %v1941 = vadd.f32 %v1725, %v1940
        %v1942 = vpop.f32.mrb[0].mxu0
        %v1943 = vadd.f32 %v1729, %v1942
        %1944 = vdwg.mxu0
        %v1945 = vmul.f32 %v1695, %v1927
        %v1946 = vmul.f32 %v1697, %v1929
        %v1947 = vmul.f32 %v1701, %v1931
        %v1948 = vmul.f32 %v1703, %v1933
        %v1949 = vmul.f32 %v1707, %v1937
        %v1950 = vmul.f32 %v1709, %v1939
        %v1951 = vmul.f32 %v1713, %v1941
        %v1952 = vmul.f32 %v1715, %v1943
        %v1954 = vlaneseq
        %v1955 = vshrl.u32 %v1954, 7
        %v1956 = vsub.s32 0, %v1955
        %v1957 = vrot.slane %v981, %v1956
        %v1958 = vlaneseq
        %v1959 = vshrl.u32 %v1958, 7
        %v1960 = vsub.s32 1, %v1959
        %v1961 = vrot.slane %v981, %v1960
        %v1964 = vmul.f32 %v1945, %v1957
        %v1965 = vmul.f32 %v1946, %v1961
        %v1966 = vmul.f32 %v1947, %v1957
        %v1967 = vmul.f32 %v1948, %v1961
        %v1968 = vmul.f32 %v1949, %v1957
        %v1969 = vmul.f32 %v1950, %v1961
        %v1970 = vmul.f32 %v1951, %v1957
        %v1971 = vmul.f32 %v1952, %v1961
        %v1973 = vlaneseq
        %v1974 = vshrl.u32 %v1973, 7
        %v1975 = vsub.s32 0, %v1974
        %v1976 = vrot.slane %v982, %v1975
        %v1977 = vlaneseq
        %v1978 = vshrl.u32 %v1977, 7
        %v1979 = vsub.s32 1, %v1978
        %v1980 = vrot.slane %v982, %v1979
        %v1983 = vadd.f32 %v1964, %v1976
        %v1984 = vadd.f32 %v1965, %v1980
        %v1985 = vadd.f32 %v1966, %v1976
        %v1986 = vadd.f32 %v1967, %v1980
        %v1987 = vadd.f32 %v1968, %v1976
        %v1988 = vadd.f32 %v1969, %v1980
        %v1989 = vadd.f32 %v1970, %v1976
        %v1990 = vadd.f32 %v1971, %v1980
        %v1991 = vmax.f32 %v1983, 0.0
        %v1992 = vmax.f32 %v1984, 0.0
        %v1993 = vmax.f32 %v1985, 0.0
        %v1994 = vmax.f32 %v1986, 0.0
        %v1995 = vmax.f32 %v1987, 0.0
        %v1996 = vmax.f32 %v1988, 0.0
        %v1997 = vmax.f32 %v1989, 0.0
        %v1998 = vmax.f32 %v1990, 0.0
        %v1999 = vand.u32 2147483647, %v1983
        %v2000 = vand.u32 2147483647, %v1984
        %v2001 = vand.u32 2147483647, %v1985
        %v2002 = vand.u32 2147483647, %v1986
        %v2003 = vand.u32 2147483647, %v1987
        %v2004 = vand.u32 2147483647, %v1988
        %v2005 = vand.u32 2147483647, %v1989
        %v2006 = vand.u32 2147483647, %v1990
        %v2007 = vsub.f32 0.0, %v1999
        %v2008 = vsub.f32 0.0, %v2000
        %v2009 = vsub.f32 0.0, %v2001
        %v2010 = vsub.f32 0.0, %v2002
        %v2011 = vsub.f32 0.0, %v2003
        %v2012 = vsub.f32 0.0, %v2004
        %v2013 = vsub.f32 0.0, %v2005
        %v2014 = vsub.f32 0.0, %v2006
        %v2015 = vmul.f32 %v2007, 1.442695
        %v2016 = vpow.pop %v2015
        %v2017 = vmul.f32 %v2008, 1.442695
        %v2018 = vpow.pop %v2017
        %v2019 = vmul.f32 %v2009, 1.442695
        %v2020 = vpow.pop %v2019
        %v2021 = vmul.f32 %v2010, 1.442695
        %v2022 = vpow.pop %v2021
        %v2023 = vmul.f32 %v2011, 1.442695
        %v2024 = vpow.pop %v2023
        %v2025 = vmul.f32 %v2012, 1.442695
        %v2026 = vpow.pop %v2025
        %v2027 = vmul.f32 %v2013, 1.442695
        %v2028 = vpow.pop %v2027
        %v2029 = vmul.f32 %v2014, 1.442695
        %v2030 = vpow.pop %v2029
        %v2031 = vadd.f32 %v2016, 1.0
        %v2032 = vadd.f32 %v2018, 1.0
        %v2033 = vadd.f32 %v2020, 1.0
        %v2034 = vadd.f32 %v2022, 1.0
        %v2035 = vadd.f32 %v2024, 1.0
        %v2036 = vadd.f32 %v2026, 1.0
        %v2037 = vadd.f32 %v2028, 1.0
        %v2038 = vadd.f32 %v2030, 1.0
        %v2039 = vlog2.pop %v2031
        %v2040 = vmul.f32 %v2039, 0.6931472
        %v2041 = vlog2.pop %v2032
        %v2042 = vmul.f32 %v2041, 0.6931472
        %v2043 = vlog2.pop %v2033
        %v2044 = vmul.f32 %v2043, 0.6931472
        %v2045 = vlog2.pop %v2034
        %v2046 = vmul.f32 %v2045, 0.6931472
        %v2047 = vlog2.pop %v2035
        %v2048 = vmul.f32 %v2047, 0.6931472
        %v2049 = vlog2.pop %v2036
        %v2050 = vmul.f32 %v2049, 0.6931472
        %v2051 = vlog2.pop %v2037
        %v2052 = vmul.f32 %v2051, 0.6931472
        %v2053 = vlog2.pop %v2038
        %v2054 = vmul.f32 %v2053, 0.6931472
        %v2055 = vadd.f32 %v1991, %v2040
        %v2056 = vadd.f32 %v1992, %v2042
        %v2057 = vadd.f32 %v1993, %v2044
        %v2058 = vadd.f32 %v1994, %v2046
        %v2059 = vadd.f32 %v1995, %v2048
        %v2060 = vadd.f32 %v1996, %v2050
        %v2061 = vadd.f32 %v1997, %v2052
        %v2062 = vadd.f32 %v1998, %v2054
        %v2064 = vsel %vm1094, %v1028, 0
        %v2067 = vsel %vm1094, %v1029, 0
        %2069 = vmatprep.subr.mxu0 %v1025
        %2070 = vmatpush1.msra.mxu0 %v1024
        %2071 = vmatprep.subr.mxu0 %v1027
        %2072 = vmatpush1.msra.mxu0 %v1026
        %2073 = vmatprep.subr.mxu0 %v2067
        %2074 = vmatpush1.msra.mxu0 %v2064
        %2075 = vmatprep.subr.mxu0 0.0
        %2076 = vmatpush1.msra.mxu0 0.0
        %2077 = vmatprep.subr.mxu0 0.0
        %2078 = vmatpush1.msra.mxu0 0.0
        %2079 = vmatprep.subr.mxu0 0.0
        %2080 = vmatpush1.msra.mxu0 0.0
        %2081 = vmatprep.subr.mxu0 0.0
        %2082 = vmatpush1.msra.mxu0 0.0
        %2083 = vmatprep.subr.mxu0 0.0
        %2084 = vmatpush1.msra.mxu0 0.0
        %2085 = vmatprep.subr.mxu0 0.0
        %2086 = vmatpush1.msra.mxu0 0.0
        %2087 = vmatprep.subr.mxu0 0.0
        %2088 = vmatpush1.msra.mxu0 0.0
        %2089 = vmatprep.subr.mxu0 0.0
        %2090 = vmatpush1.msra.mxu0 0.0
        %2091 = vmatprep.subr.mxu0 0.0
        %2092 = vmatpush1.msra.mxu0 0.0
        %2093 = vmatprep.subr.mxu0 0.0
        %2094 = vmatpush1.msra.mxu0 0.0
        %2095 = vmatprep.subr.mxu0 0.0
        %2096 = vmatpush1.msra.mxu0 0.0
        %2097 = vmatprep.subr.mxu0 0.0
        %2098 = vmatpush1.msra.mxu0 0.0
        %2099 = vmatprep.subr.mxu0 0.0
        %2100 = vmatpush1.msra.mxu0 0.0
        %2101 = vmatprep.subr.mxu0 0.0
        %2102 = vmatpush1.msra.mxu0 0.0
        %2103 = vmatprep.subr.mxu0 0.0
        %2104 = vmatpush1.msra.mxu0 0.0
        %2105 = vmatprep.subr.mxu0 0.0
        %2106 = vmatpush1.msra.mxu0 0.0
        %2107 = vmatprep.subr.mxu0 0.0
        %2108 = vmatpush1.msra.mxu0 0.0
        %2109 = vmatprep.subr.mxu0 0.0
        %2110 = vmatpush1.msra.mxu0 0.0
        %2111 = vmatprep.subr.mxu0 0.0
        %2112 = vmatpush1.msra.mxu0 0.0
        %2113 = vmatprep.subr.mxu0 0.0
        %2114 = vmatpush1.msra.mxu0 0.0
        %2115 = vmatprep.subr.mxu0 0.0
        %2116 = vmatpush1.msra.mxu0 0.0
        %2117 = vmatprep.subr.mxu0 0.0
        %2118 = vmatpush1.msra.mxu0 0.0
        %2119 = vmatprep.subr.mxu0 0.0
        %2120 = vmatpush1.msra.mxu0 0.0
        %2121 = vmatprep.subr.mxu0 0.0
        %2122 = vmatpush1.msra.mxu0 0.0
        %2123 = vmatprep.subr.mxu0 0.0
        %2124 = vmatpush1.msra.mxu0 0.0
        %2125 = vmatprep.subr.mxu0 0.0
        %2126 = vmatpush1.msra.mxu0 0.0
        %2127 = vmatprep.subr.mxu0 0.0
        %2128 = vmatpush1.msra.mxu0 0.0
        %2129 = vmatprep.subr.mxu0 0.0
        %2130 = vmatpush1.msra.mxu0 0.0
        %2131 = vmatprep.subr.mxu0 0.0
        %2132 = vmatpush1.msra.mxu0 0.0
        %2133 = vmatprep.mubr.f32.mxu0 0.0
        %2134 = vmatmul.mubr.f32.gmra.mrb[0].mxu0 %v1083
        %v2135 = vpop.f32.mrb[0].mxu0
        %v2136 = vadd.f32 0.0, %v2135
        %v2137 = vpop.f32.mrb[0].mxu0
        %v2138 = vadd.f32 0.0, %v2137
        %2139 = vmatprep.mubr.f32.mxu0 0.0
        %2140 = vmatmul.mubr.f32.gmra.mrb[0].mxu0 %v1086
        %v2141 = vpop.f32.mrb[0].mxu0
        %v2142 = vadd.f32 0.0, %v2141
        %v2143 = vpop.f32.mrb[0].mxu0
        %v2144 = vadd.f32 0.0, %v2143
        %2145 = vmatprep.mubr.f32.mxu0 0.0
        %2146 = vmatmul.mubr.f32.gmra.mrb[0].mxu0 %v1089
        %v2147 = vpop.f32.mrb[0].mxu0
        %v2148 = vadd.f32 0.0, %v2147
        %v2149 = vpop.f32.mrb[0].mxu0
        %v2150 = vadd.f32 0.0, %v2149
        %2151 = vmatprep.mubr.f32.mxu0 0.0
        %2152 = vmatmul.mubr.f32.gmra.mrb[0].mxu0 %v1092
        %v2153 = vpop.f32.mrb[0].mxu0
        %v2154 = vadd.f32 0.0, %v2153
        %v2155 = vpop.f32.mrb[0].mxu0
        %v2156 = vadd.f32 0.0, %v2155
        %2157 = vdwg.mxu0
        %v2158 = vpack.c.bf16 %v2057, %v2055
        %v2159 = vpack.c.bf16 %v2058, %v2056
        %v2160 = vpack.c.bf16 %v2061, %v2059
        %v2161 = vpack.c.bf16 %v2062, %v2060
        %v2163 = vlaneseq
        %v2164 = vshrl.u32 %v2163, 7
        %v2165 = vsub.s32 0, %v2164
        %v2166 = vrot.slane %v1021, %v2165
        %v2167 = vlaneseq
        %v2168 = vshrl.u32 %v2167, 7
        %v2169 = vsub.s32 1, %v2168
        %v2170 = vrot.slane %v1021, %v2169
        %v2205 = vunpack.c.l.b16 %v989
        %v2206 = vunpack.c.h.b16 %v989
        %v2207 = vunpack.c.l.b16 %v990
        %v2208 = vunpack.c.h.b16 %v990
        %v2209 = vunpack.c.l.b16 %v991
        %v2210 = vunpack.c.h.b16 %v991
        %v2211 = vunpack.c.l.b16 %v992
        %v2212 = vunpack.c.h.b16 %v992
        %v2213 = vunpack.c.l.b16 %v993
        %v2214 = vunpack.c.h.b16 %v993
        %v2215 = vunpack.c.l.b16 %v994
        %v2216 = vunpack.c.h.b16 %v994
        %v2217 = vunpack.c.l.b16 %v995
        %v2218 = vunpack.c.h.b16 %v995
        %v2219 = vunpack.c.l.b16 %v996
        %v2220 = vunpack.c.h.b16 %v996
        %v2221 = vunpack.c.l.b16 %v997
        %v2222 = vunpack.c.h.b16 %v997
        %v2223 = vunpack.c.l.b16 %v998
        %v2224 = vunpack.c.h.b16 %v998
        %v2225 = vunpack.c.l.b16 %v999
        %v2226 = vunpack.c.h.b16 %v999
        %v2227 = vunpack.c.l.b16 %v1000
        %v2228 = vunpack.c.h.b16 %v1000
        %v2229 = vunpack.c.l.b16 %v1001
        %v2230 = vunpack.c.h.b16 %v1001
        %v2231 = vunpack.c.l.b16 %v1002
        %v2232 = vunpack.c.h.b16 %v1002
        %v2233 = vunpack.c.l.b16 %v1003
        %v2234 = vunpack.c.h.b16 %v1003
        %v2235 = vunpack.c.l.b16 %v1004
        %v2236 = vunpack.c.h.b16 %v1004
        %v2237 = vunpack.c.l.b16 %v1005
        %v2238 = vunpack.c.h.b16 %v1005
        %v2239 = vunpack.c.l.b16 %v1006
        %v2240 = vunpack.c.h.b16 %v1006
        %v2241 = vunpack.c.l.b16 %v1007
        %v2242 = vunpack.c.h.b16 %v1007
        %v2243 = vunpack.c.l.b16 %v1008
        %v2244 = vunpack.c.h.b16 %v1008
        %v2245 = vunpack.c.l.b16 %v1009
        %v2246 = vunpack.c.h.b16 %v1009
        %v2247 = vunpack.c.l.b16 %v1010
        %v2248 = vunpack.c.h.b16 %v1010
        %v2249 = vunpack.c.l.b16 %v1011
        %v2250 = vunpack.c.h.b16 %v1011
        %v2251 = vunpack.c.l.b16 %v1012
        %v2252 = vunpack.c.h.b16 %v1012
        %v2253 = vunpack.c.l.b16 %v1013
        %v2254 = vunpack.c.h.b16 %v1013
        %v2255 = vunpack.c.l.b16 %v1014
        %v2256 = vunpack.c.h.b16 %v1014
        %v2257 = vunpack.c.l.b16 %v1015
        %v2258 = vunpack.c.h.b16 %v1015
        %v2259 = vunpack.c.l.b16 %v1016
        %v2260 = vunpack.c.h.b16 %v1016
        %v2261 = vunpack.c.l.b16 %v1017
        %v2262 = vunpack.c.h.b16 %v1017
        %v2263 = vunpack.c.l.b16 %v1018
        %v2264 = vunpack.c.h.b16 %v1018
        %v2265 = vunpack.c.l.b16 %v1019
        %v2266 = vunpack.c.h.b16 %v1019
        %v2267 = vunpack.c.l.b16 %v1020
        %v2268 = vunpack.c.h.b16 %v1020
        %v2269 = vpack.c.b16 %v2207, %v2205
        %v2270 = vpack.c.b16 %v2208, %v2206
        %v2271 = vpack.c.b16 %v2211, %v2209
        %v2272 = vpack.c.b16 %v2212, %v2210
        %v2273 = vpack.c.b16 %v2215, %v2213
        %v2274 = vpack.c.b16 %v2216, %v2214
        %v2275 = vpack.c.b16 %v2219, %v2217
        %v2276 = vpack.c.b16 %v2220, %v2218
        %v2277 = vpack.c.b16 %v2223, %v2221
        %v2278 = vpack.c.b16 %v2224, %v2222
        %v2279 = vpack.c.b16 %v2227, %v2225
        %v2280 = vpack.c.b16 %v2228, %v2226
        %v2281 = vpack.c.b16 %v2231, %v2229
        %v2282 = vpack.c.b16 %v2232, %v2230
        %v2283 = vpack.c.b16 %v2235, %v2233
        %v2284 = vpack.c.b16 %v2236, %v2234
        %v2285 = vpack.c.b16 %v2239, %v2237
        %v2286 = vpack.c.b16 %v2240, %v2238
        %v2287 = vpack.c.b16 %v2243, %v2241
        %v2288 = vpack.c.b16 %v2244, %v2242
        %v2289 = vpack.c.b16 %v2247, %v2245
        %v2290 = vpack.c.b16 %v2248, %v2246
        %v2291 = vpack.c.b16 %v2251, %v2249
        %v2292 = vpack.c.b16 %v2252, %v2250
        %v2293 = vpack.c.b16 %v2255, %v2253
        %v2294 = vpack.c.b16 %v2256, %v2254
        %v2295 = vpack.c.b16 %v2259, %v2257
        %v2296 = vpack.c.b16 %v2260, %v2258
        %v2297 = vpack.c.b16 %v2263, %v2261
        %v2298 = vpack.c.b16 %v2264, %v2262
        %v2299 = vpack.c.b16 %v2267, %v2265
        %v2300 = vpack.c.b16 %v2268, %v2266
        %2333 = vmatprep.subr.bf16.mxu0 %v2270
        %2334 = vmatpush1.bf16.msra.mxu0 %v2269
        %2335 = vmatprep.subr.bf16.mxu0 %v2272
        %2336 = vmatpush1.bf16.msra.mxu0 %v2271
        %2337 = vmatprep.subr.bf16.mxu0 %v2274
        %2338 = vmatpush1.bf16.msra.mxu0 %v2273
        %2339 = vmatprep.subr.bf16.mxu0 %v2276
        %2340 = vmatpush1.bf16.msra.mxu0 %v2275
        %2341 = vmatprep.subr.bf16.mxu0 %v2278
        %2342 = vmatpush1.bf16.msra.mxu0 %v2277
        %2343 = vmatprep.subr.bf16.mxu0 %v2280
        %2344 = vmatpush1.bf16.msra.mxu0 %v2279
        %2345 = vmatprep.subr.bf16.mxu0 %v2282
        %2346 = vmatpush1.bf16.msra.mxu0 %v2281
        %2347 = vmatprep.subr.bf16.mxu0 %v2284
        %2348 = vmatpush1.bf16.msra.mxu0 %v2283
        %2349 = vmatprep.subr.bf16.mxu0 %v2286
        %2350 = vmatpush1.bf16.msra.mxu0 %v2285
        %2351 = vmatprep.subr.bf16.mxu0 %v2288
        %2352 = vmatpush1.bf16.msra.mxu0 %v2287
        %2353 = vmatprep.subr.bf16.mxu0 %v2290
        %2354 = vmatpush1.bf16.msra.mxu0 %v2289
        %2355 = vmatprep.subr.bf16.mxu0 %v2292
        %2356 = vmatpush1.bf16.msra.mxu0 %v2291
        %2357 = vmatprep.subr.bf16.mxu0 %v2294
        %2358 = vmatpush1.bf16.msra.mxu0 %v2293
        %2359 = vmatprep.subr.bf16.mxu0 %v2296
        %2360 = vmatpush1.bf16.msra.mxu0 %v2295
        %2361 = vmatprep.subr.bf16.mxu0 %v2298
        %2362 = vmatpush1.bf16.msra.mxu0 %v2297
        %2363 = vmatprep.subr.bf16.mxu0 %v2300
        %2364 = vmatpush1.bf16.msra.mxu0 %v2299
        %2365 = vmatprep.mubr.bf16.mxu0 %v2159
        %2366 = vmatmul.mubr.bf16.gmra.mrb[0].mxu0 %v2158
        %v2367 = vpop.f32.mrb[0].mxu0
        %v2368 = vadd.f32 %v2166, %v2367
        %v2369 = vpop.f32.mrb[0].mxu0
        %v2370 = vadd.f32 %v2170, %v2369
        %v2371 = vpop.f32.mrb[0].mxu0
        %v2372 = vadd.f32 %v2166, %v2371
        %v2373 = vpop.f32.mrb[0].mxu0
        %v2374 = vadd.f32 %v2170, %v2373
        %2375 = vmatprep.mubr.bf16.mxu0 %v2161
        %2376 = vmatmul.mubr.bf16.gmra.mrb[0].mxu0 %v2160
        %v2377 = vpop.f32.mrb[0].mxu0
        %v2378 = vadd.f32 %v2166, %v2377
        %v2379 = vpop.f32.mrb[0].mxu0
        %v2380 = vadd.f32 %v2170, %v2379
        %v2381 = vpop.f32.mrb[0].mxu0
        %v2382 = vadd.f32 %v2166, %v2381
        %v2383 = vpop.f32.mrb[0].mxu0
        %v2384 = vadd.f32 %v2170, %v2383
        %2385 = vdwg.mxu0
        %v2386 = vmul.f32 %v2136, %v2368
        %v2387 = vmul.f32 %v2138, %v2370
        %v2388 = vmul.f32 %v2142, %v2372
        %v2389 = vmul.f32 %v2144, %v2374
        %v2390 = vmul.f32 %v2148, %v2378
        %v2391 = vmul.f32 %v2150, %v2380
        %v2392 = vmul.f32 %v2154, %v2382
        %v2393 = vmul.f32 %v2156, %v2384
        %v2395 = vlaneseq
        %v2396 = vshrl.u32 %v2395, 7
        %v2397 = vsub.s32 0, %v2396
        %v2398 = vrot.slane %v1022, %v2397
        %v2399 = vlaneseq
        %v2400 = vshrl.u32 %v2399, 7
        %v2401 = vsub.s32 1, %v2400
        %v2402 = vrot.slane %v1022, %v2401
        %v2405 = vmul.f32 %v2386, %v2398
        %v2406 = vmul.f32 %v2387, %v2402
        %v2407 = vmul.f32 %v2388, %v2398
        %v2408 = vmul.f32 %v2389, %v2402
        %v2409 = vmul.f32 %v2390, %v2398
        %v2410 = vmul.f32 %v2391, %v2402
        %v2411 = vmul.f32 %v2392, %v2398
        %v2412 = vmul.f32 %v2393, %v2402
        %v2414 = vlaneseq
        %v2415 = vshrl.u32 %v2414, 7
        %v2416 = vsub.s32 0, %v2415
        %v2417 = vrot.slane %v1023, %v2416
        %v2418 = vlaneseq
        %v2419 = vshrl.u32 %v2418, 7
        %v2420 = vsub.s32 1, %v2419
        %v2421 = vrot.slane %v1023, %v2420
        %v2424 = vadd.f32 %v2405, %v2417
        %v2425 = vadd.f32 %v2406, %v2421
        %v2426 = vadd.f32 %v2407, %v2417
        %v2427 = vadd.f32 %v2408, %v2421
        %v2428 = vadd.f32 %v2409, %v2417
        %v2429 = vadd.f32 %v2410, %v2421
        %v2430 = vadd.f32 %v2411, %v2417
        %v2431 = vadd.f32 %v2412, %v2421
        %v2432 = vmax.f32 %v2424, 0.0
        %v2433 = vmax.f32 %v2425, 0.0
        %v2434 = vmax.f32 %v2426, 0.0
        %v2435 = vmax.f32 %v2427, 0.0
        %v2436 = vmax.f32 %v2428, 0.0
        %v2437 = vmax.f32 %v2429, 0.0
        %v2438 = vmax.f32 %v2430, 0.0
        %v2439 = vmax.f32 %v2431, 0.0
        %v2440 = vand.u32 2147483647, %v2424
        %v2441 = vand.u32 2147483647, %v2425
        %v2442 = vand.u32 2147483647, %v2426
        %v2443 = vand.u32 2147483647, %v2427
        %v2444 = vand.u32 2147483647, %v2428
        %v2445 = vand.u32 2147483647, %v2429
        %v2446 = vand.u32 2147483647, %v2430
        %v2447 = vand.u32 2147483647, %v2431
        %v2448 = vsub.f32 0.0, %v2440
        %v2449 = vsub.f32 0.0, %v2441
        %v2450 = vsub.f32 0.0, %v2442
        %v2451 = vsub.f32 0.0, %v2443
        %v2452 = vsub.f32 0.0, %v2444
        %v2453 = vsub.f32 0.0, %v2445
        %v2454 = vsub.f32 0.0, %v2446
        %v2455 = vsub.f32 0.0, %v2447
        %v2456 = vmul.f32 %v2448, 1.442695
        %v2457 = vpow.pop %v2456
        %v2458 = vmul.f32 %v2449, 1.442695
        %v2459 = vpow.pop %v2458
        %v2460 = vmul.f32 %v2450, 1.442695
        %v2461 = vpow.pop %v2460
        %v2462 = vmul.f32 %v2451, 1.442695
        %v2463 = vpow.pop %v2462
        %v2464 = vmul.f32 %v2452, 1.442695
        %v2465 = vpow.pop %v2464
        %v2466 = vmul.f32 %v2453, 1.442695
        %v2467 = vpow.pop %v2466
        %v2468 = vmul.f32 %v2454, 1.442695
        %v2469 = vpow.pop %v2468
        %v2470 = vmul.f32 %v2455, 1.442695
        %v2471 = vpow.pop %v2470
        %v2472 = vadd.f32 %v2457, 1.0
        %v2473 = vadd.f32 %v2459, 1.0
        %v2474 = vadd.f32 %v2461, 1.0
        %v2475 = vadd.f32 %v2463, 1.0
        %v2476 = vadd.f32 %v2465, 1.0
        %v2477 = vadd.f32 %v2467, 1.0
        %v2478 = vadd.f32 %v2469, 1.0
        %v2479 = vadd.f32 %v2471, 1.0
        %v2480 = vlog2.pop %v2472
        %v2481 = vmul.f32 %v2480, 0.6931472
        %v2482 = vlog2.pop %v2473
        %v2483 = vmul.f32 %v2482, 0.6931472
        %v2484 = vlog2.pop %v2474
        %v2485 = vmul.f32 %v2484, 0.6931472
        %v2486 = vlog2.pop %v2475
        %v2487 = vmul.f32 %v2486, 0.6931472
        %v2488 = vlog2.pop %v2476
        %v2489 = vmul.f32 %v2488, 0.6931472
        %v2490 = vlog2.pop %v2477
        %v2491 = vmul.f32 %v2490, 0.6931472
        %v2492 = vlog2.pop %v2478
        %v2493 = vmul.f32 %v2492, 0.6931472
        %v2494 = vlog2.pop %v2479
        %v2495 = vmul.f32 %v2494, 0.6931472
        %v2496 = vadd.f32 %v2432, %v2481
        %v2497 = vadd.f32 %v2433, %v2483
        %v2498 = vadd.f32 %v2434, %v2485
        %v2499 = vadd.f32 %v2435, %v2487
        %v2500 = vadd.f32 %v2436, %v2489
        %v2501 = vadd.f32 %v2437, %v2491
        %v2502 = vadd.f32 %v2438, %v2493
        %v2503 = vadd.f32 %v2439, %v2495
        %v2504 = vpack.c.bf16 %v2498, %v2496
        %v2505 = vpack.c.bf16 %v2499, %v2497
        %v2506 = vpack.c.bf16 %v2502, %v2500
        %v2507 = vpack.c.bf16 %v2503, %v2501
        %v2509 = vlaneseq
        %v2510 = vshrl.u32 %v2509, 7
        %v2511 = vsub.s32 0, %v2510
        %v2512 = vrot.slane %v1062, %v2511
        %v2546 = vunpack.c.l.b16 %v1030
        %v2547 = vunpack.c.l.b16 %v1031
        %v2548 = vunpack.c.l.b16 %v1032
        %v2549 = vunpack.c.l.b16 %v1033
        %v2550 = vunpack.c.l.b16 %v1034
        %v2551 = vunpack.c.l.b16 %v1035
        %v2552 = vunpack.c.l.b16 %v1036
        %v2553 = vunpack.c.l.b16 %v1037
        %v2554 = vunpack.c.l.b16 %v1038
        %v2555 = vunpack.c.l.b16 %v1039
        %v2556 = vunpack.c.l.b16 %v1040
        %v2557 = vunpack.c.l.b16 %v1041
        %v2558 = vunpack.c.l.b16 %v1042
        %v2559 = vunpack.c.l.b16 %v1043
        %v2560 = vunpack.c.l.b16 %v1044
        %v2561 = vunpack.c.l.b16 %v1045
        %v2562 = vunpack.c.l.b16 %v1046
        %v2563 = vunpack.c.l.b16 %v1047
        %v2564 = vunpack.c.l.b16 %v1048
        %v2565 = vunpack.c.l.b16 %v1049
        %v2566 = vunpack.c.l.b16 %v1050
        %v2567 = vunpack.c.l.b16 %v1051
        %v2568 = vunpack.c.l.b16 %v1052
        %v2569 = vunpack.c.l.b16 %v1053
        %v2570 = vunpack.c.l.b16 %v1054
        %v2571 = vunpack.c.l.b16 %v1055
        %v2572 = vunpack.c.l.b16 %v1056
        %v2573 = vunpack.c.l.b16 %v1057
        %v2574 = vunpack.c.l.b16 %v1058
        %v2575 = vunpack.c.l.b16 %v1059
        %v2576 = vunpack.c.l.b16 %v1060
        %v2577 = vunpack.c.l.b16 %v1061
        %v2578 = vpack.c.b16 %v2547, %v2546
        %v2579 = vpack.c.b16 %v2549, %v2548
        %v2580 = vpack.c.b16 %v2551, %v2550
        %v2581 = vpack.c.b16 %v2553, %v2552
        %v2582 = vpack.c.b16 %v2555, %v2554
        %v2583 = vpack.c.b16 %v2557, %v2556
        %v2584 = vpack.c.b16 %v2559, %v2558
        %v2585 = vpack.c.b16 %v2561, %v2560
        %v2586 = vpack.c.b16 %v2563, %v2562
        %v2587 = vpack.c.b16 %v2565, %v2564
        %v2588 = vpack.c.b16 %v2567, %v2566
        %v2589 = vpack.c.b16 %v2569, %v2568
        %v2590 = vpack.c.b16 %v2571, %v2570
        %v2591 = vpack.c.b16 %v2573, %v2572
        %v2592 = vpack.c.b16 %v2575, %v2574
        %v2593 = vpack.c.b16 %v2577, %v2576
        %2610 = vmatprep.subr.bf16.mxu0 0
        %2611 = vmatpush1.bf16.msra.mxu0 %v2578
        %2612 = vmatprep.subr.bf16.mxu0 0
        %2613 = vmatpush1.bf16.msra.mxu0 %v2579
        %2614 = vmatprep.subr.bf16.mxu0 0
        %2615 = vmatpush1.bf16.msra.mxu0 %v2580
        %2616 = vmatprep.subr.bf16.mxu0 0
        %2617 = vmatpush1.bf16.msra.mxu0 %v2581
        %2618 = vmatprep.subr.bf16.mxu0 0
        %2619 = vmatpush1.bf16.msra.mxu0 %v2582
        %2620 = vmatprep.subr.bf16.mxu0 0
        %2621 = vmatpush1.bf16.msra.mxu0 %v2583
        %2622 = vmatprep.subr.bf16.mxu0 0
        %2623 = vmatpush1.bf16.msra.mxu0 %v2584
        %2624 = vmatprep.subr.bf16.mxu0 0
        %2625 = vmatpush1.bf16.msra.mxu0 %v2585
        %2626 = vmatprep.subr.bf16.mxu0 0
        %2627 = vmatpush1.bf16.msra.mxu0 %v2586
        %2628 = vmatprep.subr.bf16.mxu0 0
        %2629 = vmatpush1.bf16.msra.mxu0 %v2587
        %2630 = vmatprep.subr.bf16.mxu0 0
        %2631 = vmatpush1.bf16.msra.mxu0 %v2588
        %2632 = vmatprep.subr.bf16.mxu0 0
        %2633 = vmatpush1.bf16.msra.mxu0 %v2589
        %2634 = vmatprep.subr.bf16.mxu0 0
        %2635 = vmatpush1.bf16.msra.mxu0 %v2590
        %2636 = vmatprep.subr.bf16.mxu0 0
        %2637 = vmatpush1.bf16.msra.mxu0 %v2591
        %2638 = vmatprep.subr.bf16.mxu0 0
        %2639 = vmatpush1.bf16.msra.mxu0 %v2592
        %2640 = vmatprep.subr.bf16.mxu0 0
        %2641 = vmatpush1.bf16.msra.mxu0 %v2593
        %2642 = vmatprep.mubr.bf16.mxu0 %v2505
        %2643 = vmatmul.mubr.bf16.gmra.mrb[0].mxu0 %v2504
        %v2644 = vpop.f32.mrb[0].mxu0
        %v2645 = vadd.f32 %v2512, %v2644
        %v2646 = vpop.f32.mrb[0].mxu0
        %v2647 = vpop.f32.mrb[0].mxu0
        %v2648 = vadd.f32 %v2512, %v2647
        %v2649 = vpop.f32.mrb[0].mxu0
        %2650 = vmatprep.mubr.bf16.mxu0 %v2507
        %2651 = vmatmul.mubr.bf16.gmra.mrb[0].mxu0 %v2506
        %v2652 = vpop.f32.mrb[0].mxu0
        %v2653 = vadd.f32 %v2512, %v2652
        %v2654 = vpop.f32.mrb[0].mxu0
        %v2655 = vpop.f32.mrb[0].mxu0
        %v2656 = vadd.f32 %v2512, %v2655
        %v2657 = vpop.f32.mrb[0].mxu0
        %2658 = vdwg.mxu0
        %2659 = vst [vmem:[%s859] sm:$0xff] %v2645
        %2660 = vst [vmem:[%s859 + $0x8] sm:$0xff] %v2648
        %2661 = vst [vmem:[%s859 + $0x10] sm:$0xff] %v2653
        %2662 = vst [vmem:[%s859 + $0x18] sm:$0xff] %v2656
        %s2663 = sand.u32 %s508, 1
        %s2664 = scalar_lea.sflag [#allocation4], %s2663
        %s2665 = sand.u32 %s508, 1
        %s2666 = smul.addr %s2665, 32
        %s2667 = scalar_lea.vmem [#allocation22], %s2666
        // Predicated region
        $region153: #{tpu_custom_call.1} parent=103 // pred_check
          %p2668 = pneg %p518
        $region154: #{tpu_custom_call.1} parent=103 // pred_check_branch
          %2670 = sbr.rel (%p2668) target = $region156
        $region155: #{tpu_custom_call.1} parent=103 // pred_region
          %s2671 = smul.u32 4, %s44
          %s2673 = ssub.s32 512, 512
          %2674 = vsyncadd %s2664, %s2673
          %s2675 = smul.addr %s2671, 128
          %s2676 = scalar_lea.hbm %s21, %s2675
          %s2677 = sshll.u32 %s2667, 4
          %s2678 = int_to_ptr.vmem [resolvable:$true] %s2677
          %2683 = dma.vmem_to_hbm [thread:$0]  %s2678, 512, %s2676, %s2664, 128, 128, 8
        $region156: #{tpu_custom_call.1} parent=103 // pred_fallthru
          _
      $region104: #{tpu_custom_call.1} parent=5 // pred_fallthru
        _
      %p2684 = scmp.le.s32.totalorder 2, %s39
      // Predicated region
      $region157: #{tpu_custom_call.1} parent=5 // pred_check
        %p2685 = pneg %p2684
      $region158: #{tpu_custom_call.1} parent=5 // pred_check_branch
        %2687 = sbr.rel (%p2685) target = $region160
      $region159: #{tpu_custom_call.1} parent=5 // pred_region
        %s2688 = ssub.s32 %s39, 2
        // Predicated region
        $region161: #{tpu_custom_call.1} parent=159 // pred_check
          %p2689 = pneg %p524
        $region162: #{tpu_custom_call.1} parent=159 // pred_check_branch
          %2691 = sbr.rel (%p2689) target = $region164
        $region163: #{tpu_custom_call.1} parent=159 // pred_region
          %s2692 = sand.u32 %s509, 1
          %s2693 = scalar_lea.sflag [#allocation4], %s2692
          %s2694 = sand.u32 %s509, 1
          %s2695 = smul.addr %s2694, 32
          %s2696 = scalar_lea.vmem [#allocation22], %s2695
          %2697 = dma.done %s2693, 512
        $region164: #{tpu_custom_call.1} parent=159 // pred_fallthru
          _
      $region160: #{tpu_custom_call.1} parent=5 // pred_fallthru
        _
    $region6: #{tpu_custom_call.1} parent=1 // loop_footer
      %s43 = sadd.s32 1, %s39
    $region7: #{tpu_custom_call.1} parent=1 // loop_footer_branch
      %38 = sbr.rel target = $region3
    $region8: #{tpu_custom_call.1} parent=1 // loop_exit
      _
    %2698 = vsyncpa [#allocation3], 1
    %s2699 = scalar_lea.sflag [#allocation3], 1
    %2700 = vsyncpa %s2699, 1
    %2701 = vsyncpa [#allocation6], 1
    %2702 = vsyncpa [#allocation9], 1
    %2703 = vsyncpa [#allocation12], 1
    %2704 = vsyncpa [#allocation15], 1
    %2705 = vsyncpa [#allocation18], 1
    %2706 = vsyncpa [#allocation21], 1
    %2707 = vsyncpa [#allocation4], 1
    %s2708 = scalar_lea.sflag [#allocation4], 1
    %2709 = vsyncpa %s2708, 1

</llo_original>
